<compile_context>
chip_gen: v6e
topology: v6e:2x2x1
jax: 0.10.0
libtpu: 0.0.40
codegen_flags: <defaults>
</compile_context>

<pallas_src>
import functools

import jax
import jax.numpy as jnp
from jax.experimental import pallas as pl
from jax.experimental.pallas import tpu as pltpu

BN_EPS = 1e-5
MAX_TILE_B = 4096                       # single-call fast path up to this batch
VMEM_LIMIT_BYTES = 48 * 1024 * 1024     # safe on v5e/v6e (128 MiB) and v7x (64 MiB)


# --------------------------------------------------------------------------
# shared kernel helpers (feature-major: activations are (features, batch))
# --------------------------------------------------------------------------
def _fc1_relu(state_ref, action_ref, w1s_ref, w1a_ref, b1_ref, action_size):
    """relu(W1 @ [state; action] + b1) with the concat fused away.

    The state part is a bf16 MXU matmul (f32 accumulation).  The tiny
    K=action_size contribution is done as unrolled VPU broadcast FMAs so we do
    not pay a full MXU push + result-FIFO drain for a couple of useful rows.
    """
    h = jnp.dot(w1s_ref[...], state_ref[...],
                preferred_element_type=jnp.float32)            # (F1, tb) f32
    if action_size <= 8:
        w1a = w1a_ref[...]                                     # (F1, A) f32
        act = action_ref[...]                                  # (A, tb) f32
        for a in range(action_size):                           # static unroll
            h = h + w1a[:, a:a + 1] * act[a:a + 1, :]
    else:
        h = h + jnp.dot(w1a_ref[...], action_ref[...],
                        preferred_element_type=jnp.float32)
    return jnp.maximum(h + b1_ref[...], 0.0)


def _head(h1_bn, w2_ref, b2_ref, w3_ref, b3_ref, w4_ref, b4_ref):
    """fc2/fc3 on the bf16 MXU + fc4 as VPU multiply + sublane reduce."""
    h2 = jnp.dot(w2_ref[...], h1_bn.astype(jnp.bfloat16),
                 preferred_element_type=jnp.float32)           # (F2, tb)
    h2 = jnp.maximum(h2 + b2_ref[...], 0.0)
    h3 = jnp.dot(w3_ref[...], h2.astype(jnp.bfloat16),
                 preferred_element_type=jnp.float32)           # (F3, tb)
    h3 = jnp.maximum(h3 + b3_ref[...], 0.0)
    # fc4: (1, tb) lane-dense row; no 1-wide MXU pass.
    return jnp.sum(h3 * w4_ref[...], axis=0, keepdims=True) + b4_ref[...]


def _make_fused_kernel(batch, action_size):
    """Single-tile path: everything (fc1, BN stats+fold, fc2..fc4) in one step."""
    inv_b = 1.0 / float(batch)

    def kernel(state_ref, action_ref, w1s_ref, w1a_ref, b1_ref,
               gamma_ref, beta_ref, w2_ref, b2_ref, w3_ref, b3_ref,
               w4_ref, b4_ref, q_ref):
        h1 = _fc1_relu(state_ref, action_ref, w1s_ref, w1a_ref, b1_ref,
                       action_size)
        # Training-mode BatchNorm1d over the whole batch, folded into one FMA.
        mean = jnp.sum(h1, axis=1, keepdims=True) * inv_b
        var = jnp.maximum(
            jnp.sum(h1 * h1, axis=1, keepdims=True) * inv_b - mean * mean, 0.0)
        scale = gamma_ref[...] * jax.lax.rsqrt(var + BN_EPS)   # EUP slot
        shift = beta_ref[...] - mean * scale
        h1 = jnp.maximum(h1 * scale + shift, 0.0)
        q_ref[...] = _head(h1, w2_ref, b2_ref, w3_ref, b3_ref, w4_ref, b4_ref)

    return kernel


def _make_stats_kernel(batch, action_size, tile_b, b_pad):
    """Fallback pass 1: accumulate per-feature sum / sumsq of relu(fc1(x))."""

    def kernel(state_ref, action_ref, w1s_ref, w1a_ref, b1_ref,
               sum_ref, sumsq_ref):
        t = pl.program_id(0)

        @pl.when(t == 0)
        def _init():
            sum_ref[...] = jnp.zeros_like(sum_ref)
            sumsq_ref[...] = jnp.zeros_like(sumsq_ref)

        h1 = _fc1_relu(state_ref, action_ref, w1s_ref, w1a_ref, b1_ref,
                       action_size)
        if b_pad != batch:
            # zero padded batch columns so they don't corrupt the statistics
            col = jax.lax.broadcasted_iota(jnp.int32, h1.shape, 1) + t * tile_b
            h1 = jnp.where(col < batch, h1, 0.0)
        sum_ref[...] += jnp.sum(h1, axis=1, keepdims=True)
        sumsq_ref[...] += jnp.sum(h1 * h1, axis=1, keepdims=True)

    return kernel


def _make_apply_kernel(action_size):
    """Fallback pass 2: folded BN (precomputed scale/shift) + fc2..fc4."""

    def kernel(state_ref, action_ref, w1s_ref, w1a_ref, b1_ref,
               scale_ref, shift_ref, w2_ref, b2_ref, w3_ref, b3_ref,
               w4_ref, b4_ref, q_ref):
        h1 = _fc1_relu(state_ref, action_ref, w1s_ref, w1a_ref, b1_ref,
                       action_size)
        h1 = jnp.maximum(h1 * scale_ref[...] + shift_ref[...], 0.0)
        q_ref[...] = _head(h1, w2_ref, b2_ref, w3_ref, b3_ref, w4_ref, b4_ref)

    return kernel


# --------------------------------------------------------------------------
# wrapper
# --------------------------------------------------------------------------
@functools.partial(jax.jit, static_argnames=("max_tile_b",))
def critic_forward(state, action, params, *, max_tile_b=MAX_TILE_B):
    B, S = state.shape
    A = action.shape[1]
    F1 = params["w1s"].shape[0]
    F2 = params["w2"].shape[0]
    F3 = params["w3"].shape[0]

    # Feature-major activations: batch rides the 128-lane axis, so every block
    # and the q output row are lane-dense.
    state_t = state.astype(jnp.bfloat16).T        # (S, B)  bf16 MXU operand
    action_t = action.T.astype(jnp.float32)       # (A, B)  f32 (VPU FMA path)

    # Pre-cast the MXU weights to bf16 outside the kernel; biases / BN / fc4
    # stay in f32 (VPU / EUP path).
    w1s = params["w1s"].astype(jnp.bfloat16)
    w1a = params["w1a"].astype(jnp.float32)
    w2 = params["w2"].astype(jnp.bfloat16)
    w3 = params["w3"].astype(jnp.bfloat16)
    b1, gamma, beta = params["b1"], params["gamma"], params["beta"]
    b2, b3, w4, b4 = params["b2"], params["b3"], params["w4"], params["b4"]

    matmul_flops = 2 * B * (S * F1 + A * F1 + F1 * F2 + F2 * F3 + F3)
    input_bytes = B * S * 2 + B * A * 4
    weight_bytes = (F1 * S * 2 + F1 * A * 4 + F2 * F1 * 2 + F3 * F2 * 2
                    + 4 * (3 * F1 + F2 + 2 * F3 + 2))
    bytes_accessed = input_bytes + weight_bytes + B * 4

    def const_spec(shape):
        # constant index_map -> block DMA'd once, stays VMEM-resident
        return pl.BlockSpec(shape, lambda t: (0, 0))

    # ---------------- fast path: whole batch in a single grid step ----------
    if B <= max_tile_b:
        kernel = _make_fused_kernel(B, A)
        grid_spec = pltpu.PrefetchScalarGridSpec(
            num_scalar_prefetch=0,
            grid=(1,),
            in_specs=[
                const_spec((S, B)), const_spec((A, B)),
                const_spec((F1, S)), const_spec((F1, A)), const_spec((F1, 1)),
                const_spec((F1, 1)), const_spec((F1, 1)),
                const_spec((F2, F1)), const_spec((F2, 1)),
                const_spec((F3, F2)), const_spec((F3, 1)),
                const_spec((F3, 1)), const_spec((1, 1)),
            ],
            out_specs=const_spec((1, B)),
        )
        q_row = pl.pallas_call(
            kernel,
            out_shape=jax.ShapeDtypeStruct((1, B), jnp.float32),
            grid_spec=grid_spec,
            compiler_params=pltpu.CompilerParams(
                dimension_semantics=("arbitrary",),
                vmem_limit_bytes=VMEM_LIMIT_BYTES),
            cost_estimate=pl.CostEstimate(
                flops=matmul_flops, transcendentals=F1,
                bytes_accessed=bytes_accessed),
        )(state_t, action_t, w1s, w1a, b1, gamma, beta, w2, b2, w3, b3, w4, b4)
        return q_row.T                                           # (B, 1)

    # ---------------- fallback: batch tiled, two passes ---------------------
    tile_b = max_tile_b
    if tile_b % 128 != 0:
        raise ValueError("max_tile_b must be a multiple of 128 for batches "
                         "larger than max_tile_b")
    num_tiles = pl.cdiv(B, tile_b)
    b_pad = num_tiles * tile_b
    if b_pad != B:
        state_t = jnp.pad(state_t, ((0, 0), (0, b_pad - B)))
        action_t = jnp.pad(action_t, ((0, 0), (0, b_pad - B)))

    # pass 1: BN sum / sum-of-squares accumulated into resident (F1,1) outputs.
    h1_sum, h1_sumsq = pl.pallas_call(
        _make_stats_kernel(B, A, tile_b, b_pad),
        out_shape=(jax.ShapeDtypeStruct((F1, 1), jnp.float32),
                   jax.ShapeDtypeStruct((F1, 1), jnp.float32)),
        grid_spec=pltpu.PrefetchScalarGridSpec(
            num_scalar_prefetch=0,
            grid=(num_tiles,),
            in_specs=[
                pl.BlockSpec((S, tile_b), lambda t: (0, t)),
                pl.BlockSpec((A, tile_b), lambda t: (0, t)),
                const_spec((F1, S)), const_spec((F1, A)), const_spec((F1, 1)),
            ],
            out_specs=(const_spec((F1, 1)), const_spec((F1, 1))),
        ),
        compiler_params=pltpu.CompilerParams(
            dimension_semantics=("arbitrary",),       # resident accumulators
            vmem_limit_bytes=VMEM_LIMIT_BYTES),
        cost_estimate=pl.CostEstimate(
            flops=2 * B * (S + A) * F1 + 4 * B * F1, transcendentals=0,
            bytes_accessed=input_bytes + F1 * (2 * S + 4 * A + 12)),
    )(state_t, action_t, w1s, w1a, b1)

    # fold BatchNorm once in XLA (hoisted out of the per-tile kernel)
    inv_b = 1.0 / B
    mean = h1_sum * inv_b
    var = jnp.maximum(h1_sumsq * inv_b - mean * mean, 0.0)
    scale = gamma * jax.lax.rsqrt(var + BN_EPS)
    shift = beta - mean * scale

    # pass 2: folded BN + fc2..fc4; "parallel" tiles -> v7x megacore sharding.
    q_row = pl.pallas_call(
        _make_apply_kernel(A),
        out_shape=jax.ShapeDtypeStruct((1, b_pad), jnp.float32),
        grid_spec=pltpu.PrefetchScalarGridSpec(
            num_scalar_prefetch=0,
            grid=(num_tiles,),
            in_specs=[
                pl.BlockSpec((S, tile_b), lambda t: (0, t)),
                pl.BlockSpec((A, tile_b), lambda t: (0, t)),
                const_spec((F1, S)), const_spec((F1, A)), const_spec((F1, 1)),
                const_spec((F1, 1)), const_spec((F1, 1)),    # scale, shift
                const_spec((F2, F1)), const_spec((F2, 1)),
                const_spec((F3, F2)), const_spec((F3, 1)),
                const_spec((F3, 1)), const_spec((1, 1)),
            ],
            out_specs=pl.BlockSpec((1, tile_b), lambda t: (0, t)),
        ),
        compiler_params=pltpu.CompilerParams(
            dimension_semantics=("parallel",),
            vmem_limit_bytes=VMEM_LIMIT_BYTES),
        cost_estimate=pl.CostEstimate(
            flops=matmul_flops, transcendentals=0,
            bytes_accessed=bytes_accessed),
    )(state_t, action_t, w1s, w1a, b1, scale, shift, w2, b2, w3, b3, w4, b4)

    return q_row[:, :B].T                                        # (B, 1)


# --------------------------------------------------------------------------
# params (PyTorch (out, in) layout) and pure-JAX reference
# --------------------------------------------------------------------------
def init_critic_params(key, state_sizes, action_sizes,
                       fcs1_units=128, fc2_units=256, fc3_units=128):
    """Deterministic init mirroring Critic.__init__ / reset_parameters."""
    in_dim = state_sizes + action_sizes
    ks = jax.random.split(key, 8)

    def uniform(k, shape, lim):
        return jax.random.uniform(k, shape, jnp.float32, -lim, lim)

    # hidden_init in the reference uses weight.size()[0] == out_features.
    lim1 = fcs1_units ** -0.5
    lim2 = fc2_units ** -0.5
    lim3 = fc3_units ** -0.5

    w1 = uniform(ks[0], (fcs1_units, in_dim), lim1)       # (out, in)
    return {
        "w1s": w1[:, :state_sizes],                       # (F1, S)
        "w1a": w1[:, state_sizes:],                       # (F1, A)
        "b1": uniform(ks[1], (fcs1_units, 1), in_dim ** -0.5),
        "gamma": jnp.ones((fcs1_units, 1), jnp.float32),  # BatchNorm1d weight
        "beta": jnp.zeros((fcs1_units, 1), jnp.float32),  # BatchNorm1d bias
        "w2": uniform(ks[2], (fc2_units, fcs1_units), lim2),
        "b2": uniform(ks[3], (fc2_units, 1), fcs1_units ** -0.5),
        "w3": uniform(ks[4], (fc3_units, fc2_units), lim3),
        "b3": uniform(ks[5], (fc3_units, 1), fc2_units ** -0.5),
        "w4": uniform(ks[6], (fc3_units, 1), 3e-3),       # fc4 weight (F3, 1)
        "b4": uniform(ks[7], (1, 1), fc3_units ** -0.5),
    }


def critic_forward_ref(state, action, params, *, emulate_bf16=False):
    """Pure-JAX reference (training-mode BatchNorm, PyTorch semantics)."""

    def mm(x, w):  # x: (B, in), w: (out, in) -> (B, out)
        if emulate_bf16:
            return jnp.dot(x.astype(jnp.bfloat16), w.T.astype(jnp.bfloat16),
                           preferred_element_type=jnp.float32)
        return x @ w.T

    h1 = mm(state, params["w1s"]) + action @ params["w1a"].T + params["b1"].T
    h1 = jnp.maximum(h1, 0.0)
    mean = jnp.mean(h1, axis=0, keepdims=True)
    var = jnp.mean((h1 - mean) ** 2, axis=0, keepdims=True)   # biased variance
    h1 = (h1 - mean) / jnp.sqrt(var + BN_EPS) * params["gamma"].T + params["beta"].T
    h1 = jnp.maximum(h1, 0.0)
    h2 = jnp.maximum(mm(h1, params["w2"]) + params["b2"].T, 0.0)
    h3 = jnp.maximum(mm(h2, params["w3"]) + params["b3"].T, 0.0)
    return h3 @ params["w4"] + params["b4"]


if __name__ == "__main__":
    key = jax.random.PRNGKey(0)
    kp, ks1, ka1, ks2, ka2 = jax.random.split(key, 5)

    state_sizes, action_sizes = 24, 2          # Tennis-style env dims
    params = init_critic_params(kp, state_sizes, action_sizes)

    # --- small batch: exercises the single-step fused path -------------------
    batch = 8
    state = jax.random.normal(ks1, (batch, state_sizes), jnp.float32)
    action = jax.random.normal(ka1, (batch, action_sizes), jnp.float32)

    q = jax.block_until_ready(critic_forward(state, action, params))
    assert q.shape == (batch, 1)

    q_bf16 = critic_forward_ref(state, action, params, emulate_bf16=True)
    q_f32 = critic_forward_ref(state, action, params)
    d_bf16 = jnp.max(jnp.abs(q - q_bf16))
    d_f32 = jnp.max(jnp.abs(q - q_f32))
    assert jnp.allclose(q, q_bf16, atol=2e-3, rtol=2e-3), f"fused path: {d_bf16}"
    assert jnp.allclose(q, q_f32, atol=2e-2, rtol=2e-2), f"fused path f32: {d_f32}"

    # --- larger batch with a tiny tile: exercises the tiled stats/apply path -
    batch2 = 300
    state2 = jax.random.normal(ks2, (batch2, state_sizes), jnp.float32)
    action2 = jax.random.normal(ka2, (batch2, action_sizes), jnp.float32)

    q2 = jax.block_until_ready(
        critic_forward(state2, action2, params, max_tile_b=128))
    assert q2.shape == (batch2, 1)

    q2_bf16 = critic_forward_ref(state2, action2, params, emulate_bf16=True)
    q2_f32 = critic_forward_ref(state2, action2, params)
    d2_bf16 = jnp.max(jnp.abs(q2 - q2_bf16))
    d2_f32 = jnp.max(jnp.abs(q2 - q2_f32))
    assert jnp.allclose(q2, q2_bf16, atol=2e-3, rtol=2e-3), f"tiled path: {d2_bf16}"
    assert jnp.allclose(q2, q2_f32, atol=2e-2, rtol=2e-2), f"tiled path f32: {d2_f32}"

    print("KERNEL_OK")
</pallas_src>

<mosaic_0001>
module attributes {stable_mosaic.version = 11 : i64} {
  func.func @kernel(%arg0: i32, %arg1: memref<24x8xbf16, #tpu.memory_space<vmem>>, %arg2: memref<2x8xf32, #tpu.memory_space<vmem>>, %arg3: memref<128x24xbf16, #tpu.memory_space<vmem>>, %arg4: memref<128x2xf32, #tpu.memory_space<vmem>>, %arg5: memref<128x1xf32, #tpu.memory_space<vmem>>, %arg6: memref<128x1xf32, #tpu.memory_space<vmem>>, %arg7: memref<128x1xf32, #tpu.memory_space<vmem>>, %arg8: memref<256x128xbf16, #tpu.memory_space<vmem>>, %arg9: memref<256x1xf32, #tpu.memory_space<vmem>>, %arg10: memref<128x256xbf16, #tpu.memory_space<vmem>>, %arg11: memref<128x1xf32, #tpu.memory_space<vmem>>, %arg12: memref<128x1xf32, #tpu.memory_space<vmem>>, %arg13: memref<1x1xf32, #tpu.memory_space<vmem>>, %arg14: memref<1x8xf32, #tpu.memory_space<vmem>>) attributes {dimension_semantics = [#tpu.dimension_semantics<arbitrary>], iteration_bounds = array<i64: 1>, scalar_prefetch = 0 : i64, scratch_operands = 0 : i64, tpu.core_type = #tpu.core_type<tc>, window_params = [{pipeline_mode = #tpu.pipeline_mode<synchronous>, transform_indices = @transform_0, window_bounds = array<i64: 24, 8>}, {pipeline_mode = #tpu.pipeline_mode<synchronous>, transform_indices = @transform_1, window_bounds = array<i64: 2, 8>}, {pipeline_mode = #tpu.pipeline_mode<synchronous>, transform_indices = @transform_2, window_bounds = array<i64: 128, 24>}, {pipeline_mode = #tpu.pipeline_mode<synchronous>, transform_indices = @transform_3, window_bounds = array<i64: 128, 2>}, {pipeline_mode = #tpu.pipeline_mode<synchronous>, transform_indices = @transform_4, window_bounds = array<i64: 128, 1>}, {pipeline_mode = #tpu.pipeline_mode<synchronous>, transform_indices = @transform_5, window_bounds = array<i64: 128, 1>}, {pipeline_mode = #tpu.pipeline_mode<synchronous>, transform_indices = @transform_6, window_bounds = array<i64: 128, 1>}, {pipeline_mode = #tpu.pipeline_mode<synchronous>, transform_indices = @transform_7, window_bounds = array<i64: 256, 128>}, {pipeline_mode = #tpu.pipeline_mode<synchronous>, transform_indices = @transform_8, window_bounds = array<i64: 256, 1>}, {pipeline_mode = #tpu.pipeline_mode<synchronous>, transform_indices = @transform_9, window_bounds = array<i64: 128, 256>}, {pipeline_mode = #tpu.pipeline_mode<synchronous>, transform_indices = @transform_10, window_bounds = array<i64: 128, 1>}, {pipeline_mode = #tpu.pipeline_mode<synchronous>, transform_indices = @transform_11, window_bounds = array<i64: 128, 1>}, {pipeline_mode = #tpu.pipeline_mode<synchronous>, transform_indices = @transform_12, window_bounds = array<i64: 1, 1>}, {pipeline_mode = #tpu.pipeline_mode<synchronous>, transform_indices = @transform_13, window_bounds = array<i64: 1, 8>}]} {
    %c0 = arith.constant 0 : index
    %c0_0 = arith.constant 0 : index
    %0 = vector.load %arg3[%c0, %c0_0] : memref<128x24xbf16, #tpu.memory_space<vmem>>, vector<128x24xbf16>
    %c0_1 = arith.constant 0 : index
    %c0_2 = arith.constant 0 : index
    %1 = vector.load %arg1[%c0_1, %c0_2] : memref<24x8xbf16, #tpu.memory_space<vmem>>, vector<24x8xbf16>
    %cst = arith.constant dense<0.000000e+00> : vector<128x8xf32>
    %2 = tpu.matmul %0, %1, %cst {dimension_numbers = #tpu.dot_dimension_numbers<[1], [0], [0], [1], [0, 0, 1, 1], [], []>} : vector<128x24xbf16>, vector<24x8xbf16>, vector<128x8xf32> -> vector<128x8xf32>
    %c0_3 = arith.constant 0 : index
    %c0_4 = arith.constant 0 : index
    %3 = vector.load %arg4[%c0_3, %c0_4] : memref<128x2xf32, #tpu.memory_space<vmem>>, vector<128x2xf32>
    %c0_5 = arith.constant 0 : index
    %c0_6 = arith.constant 0 : index
    %4 = vector.load %arg2[%c0_5, %c0_6] : memref<2x8xf32, #tpu.memory_space<vmem>>, vector<2x8xf32>
    %5 = vector.extract_strided_slice %3 {offsets = [0, 0], sizes = [128, 1], strides = [1, 1]} : vector<128x2xf32> to vector<128x1xf32>
    %6 = vector.extract_strided_slice %4 {offsets = [0, 0], sizes = [1, 8], strides = [1, 1]} : vector<2x8xf32> to vector<1x8xf32>
    %7 = vector.broadcast %5 : vector<128x1xf32> to vector<128x8xf32>
    %8 = vector.broadcast %6 : vector<1x8xf32> to vector<128x8xf32>
    %9 = arith.mulf %7, %8 : vector<128x8xf32>
    %10 = arith.addf %2, %9 : vector<128x8xf32>
    %11 = vector.extract_strided_slice %3 {offsets = [0, 1], sizes = [128, 1], strides = [1, 1]} : vector<128x2xf32> to vector<128x1xf32>
    %12 = vector.extract_strided_slice %4 {offsets = [1, 0], sizes = [1, 8], strides = [1, 1]} : vector<2x8xf32> to vector<1x8xf32>
    %13 = vector.broadcast %11 : vector<128x1xf32> to vector<128x8xf32>
    %14 = vector.broadcast %12 : vector<1x8xf32> to vector<128x8xf32>
    %15 = arith.mulf %13, %14 : vector<128x8xf32>
    %16 = arith.addf %10, %15 : vector<128x8xf32>
    %c0_7 = arith.constant 0 : index
    %c0_8 = arith.constant 0 : index
    %17 = vector.load %arg5[%c0_7, %c0_8] : memref<128x1xf32, #tpu.memory_space<vmem>>, vector<128x1xf32>
    %18 = vector.broadcast %17 : vector<128x1xf32> to vector<128x8xf32>
    %19 = arith.addf %16, %18 : vector<128x8xf32>
    %cst_9 = arith.constant 0.000000e+00 : f32
    %20 = vector.broadcast %cst_9 : f32 to vector<128x8xf32>
    %21 = arith.maximumf %19, %20 : vector<128x8xf32>
    %cst_10 = arith.constant dense<0.000000e+00> : vector<128xf32>
    %22 = vector.multi_reduction <add>, %21, %cst_10 [1] : vector<128x8xf32> to vector<128xf32>
    %23 = vector.shape_cast %22 : vector<128xf32> to vector<128x1xf32>
    %cst_11 = arith.constant 1.250000e-01 : f32
    %24 = vector.broadcast %cst_11 : f32 to vector<128x1xf32>
    %25 = arith.mulf %23, %24 : vector<128x1xf32>
    %26 = arith.mulf %21, %21 : vector<128x8xf32>
    %cst_12 = arith.constant dense<0.000000e+00> : vector<128xf32>
    %27 = vector.multi_reduction <add>, %26, %cst_12 [1] : vector<128x8xf32> to vector<128xf32>
    %28 = vector.shape_cast %27 : vector<128xf32> to vector<128x1xf32>
    %cst_13 = arith.constant 1.250000e-01 : f32
    %29 = vector.broadcast %cst_13 : f32 to vector<128x1xf32>
    %30 = arith.mulf %28, %29 : vector<128x1xf32>
    %31 = arith.mulf %25, %25 : vector<128x1xf32>
    %32 = arith.subf %30, %31 : vector<128x1xf32>
    %cst_14 = arith.constant 0.000000e+00 : f32
    %33 = vector.broadcast %cst_14 : f32 to vector<128x1xf32>
    %34 = arith.maximumf %32, %33 : vector<128x1xf32>
    %c0_15 = arith.constant 0 : index
    %c0_16 = arith.constant 0 : index
    %35 = vector.load %arg6[%c0_15, %c0_16] : memref<128x1xf32, #tpu.memory_space<vmem>>, vector<128x1xf32>
    %cst_17 = arith.constant 9.99999974E-6 : f32
    %36 = vector.broadcast %cst_17 : f32 to vector<128x1xf32>
    %37 = arith.addf %34, %36 : vector<128x1xf32>
    %38 = math.rsqrt %37 : vector<128x1xf32>
    %39 = arith.mulf %35, %38 : vector<128x1xf32>
    %c0_18 = arith.constant 0 : index
    %c0_19 = arith.constant 0 : index
    %40 = vector.load %arg7[%c0_18, %c0_19] : memref<128x1xf32, #tpu.memory_space<vmem>>, vector<128x1xf32>
    %41 = arith.mulf %25, %39 : vector<128x1xf32>
    %42 = arith.subf %40, %41 : vector<128x1xf32>
    %43 = vector.broadcast %39 : vector<128x1xf32> to vector<128x8xf32>
    %44 = arith.mulf %21, %43 : vector<128x8xf32>
    %45 = vector.broadcast %42 : vector<128x1xf32> to vector<128x8xf32>
    %46 = arith.addf %44, %45 : vector<128x8xf32>
    %cst_20 = arith.constant 0.000000e+00 : f32
    %47 = vector.broadcast %cst_20 : f32 to vector<128x8xf32>
    %48 = arith.maximumf %46, %47 : vector<128x8xf32>
    %c0_21 = arith.constant 0 : index
    %c0_22 = arith.constant 0 : index
    %49 = vector.load %arg8[%c0_21, %c0_22] : memref<256x128xbf16, #tpu.memory_space<vmem>>, vector<256x128xbf16>
    %50 = arith.truncf %48 : vector<128x8xf32> to vector<128x8xbf16>
    %cst_23 = arith.constant dense<0.000000e+00> : vector<256x8xf32>
    %51 = tpu.matmul %49, %50, %cst_23 {dimension_numbers = #tpu.dot_dimension_numbers<[1], [0], [0], [1], [0, 0, 1, 1], [], []>} : vector<256x128xbf16>, vector<128x8xbf16>, vector<256x8xf32> -> vector<256x8xf32>
    %c0_24 = arith.constant 0 : index
    %c0_25 = arith.constant 0 : index
    %52 = vector.load %arg9[%c0_24, %c0_25] : memref<256x1xf32, #tpu.memory_space<vmem>>, vector<256x1xf32>
    %53 = vector.broadcast %52 : vector<256x1xf32> to vector<256x8xf32>
    %54 = arith.addf %51, %53 : vector<256x8xf32>
    %cst_26 = arith.constant 0.000000e+00 : f32
    %55 = vector.broadcast %cst_26 : f32 to vector<256x8xf32>
    %56 = arith.maximumf %54, %55 : vector<256x8xf32>
    %c0_27 = arith.constant 0 : index
    %c0_28 = arith.constant 0 : index
    %57 = vector.load %arg10[%c0_27, %c0_28] : memref<128x256xbf16, #tpu.memory_space<vmem>>, vector<128x256xbf16>
    %58 = arith.truncf %56 : vector<256x8xf32> to vector<256x8xbf16>
    %cst_29 = arith.constant dense<0.000000e+00> : vector<128x8xf32>
    %59 = tpu.matmul %57, %58, %cst_29 {dimension_numbers = #tpu.dot_dimension_numbers<[1], [0], [0], [1], [0, 0, 1, 1], [], []>} : vector<128x256xbf16>, vector<256x8xbf16>, vector<128x8xf32> -> vector<128x8xf32>
    %c0_30 = arith.constant 0 : index
    %c0_31 = arith.constant 0 : index
    %60 = vector.load %arg11[%c0_30, %c0_31] : memref<128x1xf32, #tpu.memory_space<vmem>>, vector<128x1xf32>
    %61 = vector.broadcast %60 : vector<128x1xf32> to vector<128x8xf32>
    %62 = arith.addf %59, %61 : vector<128x8xf32>
    %cst_32 = arith.constant 0.000000e+00 : f32
    %63 = vector.broadcast %cst_32 : f32 to vector<128x8xf32>
    %64 = arith.maximumf %62, %63 : vector<128x8xf32>
    %c0_33 = arith.constant 0 : index
    %c0_34 = arith.constant 0 : index
    %65 = vector.load %arg12[%c0_33, %c0_34] : memref<128x1xf32, #tpu.memory_space<vmem>>, vector<128x1xf32>
    %66 = vector.broadcast %65 : vector<128x1xf32> to vector<128x8xf32>
    %67 = arith.mulf %64, %66 : vector<128x8xf32>
    %cst_35 = arith.constant dense<0.000000e+00> : vector<8xf32>
    %68 = vector.multi_reduction <add>, %67, %cst_35 [0] : vector<128x8xf32> to vector<8xf32>
    %69 = vector.shape_cast %68 : vector<8xf32> to vector<1x8xf32>
    %c0_36 = arith.constant 0 : index
    %c0_37 = arith.constant 0 : index
    %70 = vector.load %arg13[%c0_36, %c0_37] : memref<1x1xf32, #tpu.memory_space<vmem>>, vector<1x1xf32>
    %71 = vector.broadcast %70 : vector<1x1xf32> to vector<1x8xf32>
    %72 = arith.addf %69, %71 : vector<1x8xf32>
    %c0_38 = arith.constant 0 : index
    %c0_39 = arith.constant 0 : index
    %73 = vector.load %arg14[%c0_38, %c0_39] : memref<1x8xf32, #tpu.memory_space<vmem>>, vector<1x8xf32>
    tpu.vector_store %arg14[%c0_38, %c0_39], %72 {strides = array<i32>} : memref<1x8xf32, #tpu.memory_space<vmem>>, vector<1x8xf32>,
    return
  }
  func.func @transform_0(%arg0: i32) -> (i32, i32) {
    %c0_i32 = arith.constant 0 : i32
    %c0_i32_0 = arith.constant 0 : i32
    %c0_i32_1 = arith.constant 0 : i32
    return %c0_i32, %c0_i32_0 : i32, i32
  }
  func.func @transform_1(%arg0: i32) -> (i32, i32) {
    %c0_i32 = arith.constant 0 : i32
    %c0_i32_0 = arith.constant 0 : i32
    %c0_i32_1 = arith.constant 0 : i32
    return %c0_i32, %c0_i32_0 : i32, i32
  }
  func.func @transform_2(%arg0: i32) -> (i32, i32) {
    %c0_i32 = arith.constant 0 : i32
    %c0_i32_0 = arith.constant 0 : i32
    %c0_i32_1 = arith.constant 0 : i32
    return %c0_i32, %c0_i32_0 : i32, i32
  }
  func.func @transform_3(%arg0: i32) -> (i32, i32) {
    %c0_i32 = arith.constant 0 : i32
    %c0_i32_0 = arith.constant 0 : i32
    %c0_i32_1 = arith.constant 0 : i32
    return %c0_i32, %c0_i32_0 : i32, i32
  }
  func.func @transform_4(%arg0: i32) -> (i32, i32) {
    %c0_i32 = arith.constant 0 : i32
    %c0_i32_0 = arith.constant 0 : i32
    %c0_i32_1 = arith.constant 0 : i32
    return %c0_i32, %c0_i32_0 : i32, i32
  }
  func.func @transform_5(%arg0: i32) -> (i32, i32) {
    %c0_i32 = arith.constant 0 : i32
    %c0_i32_0 = arith.constant 0 : i32
    %c0_i32_1 = arith.constant 0 : i32
    return %c0_i32, %c0_i32_0 : i32, i32
  }
  func.func @transform_6(%arg0: i32) -> (i32, i32) {
    %c0_i32 = arith.constant 0 : i32
    %c0_i32_0 = arith.constant 0 : i32
    %c0_i32_1 = arith.constant 0 : i32
    return %c0_i32, %c0_i32_0 : i32, i32
  }
  func.func @transform_7(%arg0: i32) -> (i32, i32) {
    %c0_i32 = arith.constant 0 : i32
    %c0_i32_0 = arith.constant 0 : i32
    %c0_i32_1 = arith.constant 0 : i32
    return %c0_i32, %c0_i32_0 : i32, i32
  }
  func.func @transform_8(%arg0: i32) -> (i32, i32) {
    %c0_i32 = arith.constant 0 : i32
    %c0_i32_0 = arith.constant 0 : i32
    %c0_i32_1 = arith.constant 0 : i32
    return %c0_i32, %c0_i32_0 : i32, i32
  }
  func.func @transform_9(%arg0: i32) -> (i32, i32) {
    %c0_i32 = arith.constant 0 : i32
    %c0_i32_0 = arith.constant 0 : i32
    %c0_i32_1 = arith.constant 0 : i32
    return %c0_i32, %c0_i32_0 : i32, i32
  }
  func.func @transform_10(%arg0: i32) -> (i32, i32) {
    %c0_i32 = arith.constant 0 : i32
    %c0_i32_0 = arith.constant 0 : i32
    %c0_i32_1 = arith.constant 0 : i32
    return %c0_i32, %c0_i32_0 : i32, i32
  }
  func.func @transform_11(%arg0: i32) -> (i32, i32) {
    %c0_i32 = arith.constant 0 : i32
    %c0_i32_0 = arith.constant 0 : i32
    %c0_i32_1 = arith.constant 0 : i32
    return %c0_i32, %c0_i32_0 : i32, i32
  }
  func.func @transform_12(%arg0: i32) -> (i32, i32) {
    %c0_i32 = arith.constant 0 : i32
    %c0_i32_0 = arith.constant 0 : i32
    %c0_i32_1 = arith.constant 0 : i32
    return %c0_i32, %c0_i32_0 : i32, i32
  }
  func.func @transform_13(%arg0: i32) -> (i32, i32) {
    %c0_i32 = arith.constant 0 : i32
    %c0_i32_0 = arith.constant 0 : i32
    %c0_i32_1 = arith.constant 0 : i32
    return %c0_i32, %c0_i32_0 : i32, i32
  }
}

</mosaic_0001>

<llo_original>
// kernel: critic_forward.1
$region0: #{critic_forward.1}
  #allocation0 [shape = 'u32[]', space=smem, size = 0x4, offset = 0x4, fixed_abs, tag = 'smem constant byte address 0x4 - core index']
  #allocation1 [shape = 'u32[144,128]{1,0:T(1,128)}', space=vmem, size = 0x12000, scoped, tag = 'internal scratch']
  #allocation2 [shape = 'f32[1,1]{1,0:T(1,128)S(1)}', space=vmem, size = 0x200, scoped, tag = 'scoped memory for critic_forward.1']
  %s0 = inlined_call_operand.vmem [shape: bf16[24,8], index: 0, kind: input, shape index: {}]
  %s1 = inlined_call_operand.vmem [shape: f32[2,8], index: 1, kind: input, shape index: {}]
  %s2 = inlined_call_operand.vmem [shape: bf16[128,24], index: 2, kind: input, shape index: {}]
  %s3 = inlined_call_operand.vmem [shape: f32[128,2], index: 3, kind: input, shape index: {}]
  %s4 = inlined_call_operand.vmem [shape: f32[128,1], index: 4, kind: input, shape index: {}]
  %s5 = inlined_call_operand.vmem [shape: f32[128,1], index: 5, kind: input, shape index: {}]
  %s6 = inlined_call_operand.vmem [shape: f32[128,1], index: 6, kind: input, shape index: {}]
  %s7 = inlined_call_operand.vmem [shape: bf16[256,128], index: 7, kind: input, shape index: {}]
  %s8 = inlined_call_operand.vmem [shape: f32[256,1], index: 8, kind: input, shape index: {}]
  %s9 = inlined_call_operand.vmem [shape: bf16[128,256], index: 9, kind: input, shape index: {}]
  %s10 = inlined_call_operand.vmem [shape: f32[128,1], index: 10, kind: input, shape index: {}]
  %s11 = inlined_call_operand.vmem [shape: f32[128,1], index: 11, kind: input, shape index: {}]
  %s12 = inlined_call_operand.<no memory space> [shape: f32[1,1], index: 12, kind: input, shape index: {}]
  %s13 = inlined_call_operand.hbm [shape: f32[1,8], index: 13, kind: output, shape index: {}]
  %s14 = sld [smem:[#allocation0]]
  $region62: #{critic_forward.1} parent=0
    _
  %s16 = ssub.s32 1, %s14
  %s17 = scalar_select 0, %s16, %s14
  %v18 = vstv %s12
  %19 = vst [vmem:[#allocation2] sm:$0x1] %v18
  $region1: #{critic_forward.1} parent=0
    #allocation3 [shape = 'u8[512]{0}', space=vmem, size = 0x400, scoped, tag = 'output window, operand 0, single buffered']
    #allocation4 [shape = 's32[1]{0}', space=sflag, size = 0x4, scoped, tag = 'scoped memory for critic_forward.1']
    %20 = vsyncpa [#allocation4], 0
    // Predicated region
    $region2: #{critic_forward.1} parent=1 // pred_check
      _
    $region3: #{critic_forward.1} parent=1 // pred_check_branch
      %22 = sbr.rel (0) target = $region5
    $region4: #{critic_forward.1} parent=1 // pred_region
      _
    $region5: #{critic_forward.1} parent=1 // pred_fallthru
      _
    // Predicated region
    $region6: #{critic_forward.1} parent=1 // pred_check
      _
    $region7: #{critic_forward.1} parent=1 // pred_check_branch
      %24 = sbr.rel (0) target = $region9
    $region8: #{critic_forward.1} parent=1 // pred_region
      _
    $region9: #{critic_forward.1} parent=1 // pred_fallthru
      _
    // Predicated region
    $region10: #{critic_forward.1} parent=1 // pred_check
      _
    $region11: #{critic_forward.1} parent=1 // pred_check_branch
      %26 = sbr.rel (0) target = $region13
    $region12: #{critic_forward.1} parent=1 // pred_region
      _
    $region13: #{critic_forward.1} parent=1 // pred_fallthru
      _
    // Predicated region
    $region14: #{critic_forward.1} parent=1 // pred_check
      _
    $region15: #{critic_forward.1} parent=1 // pred_check_branch
      %28 = sbr.rel (0) target = $region17
    $region16: #{critic_forward.1} parent=1 // pred_region
      _
    $region17: #{critic_forward.1} parent=1 // pred_fallthru
      _
    // Predicated region
    $region18: #{critic_forward.1} parent=1 // pred_check
      _
    $region19: #{critic_forward.1} parent=1 // pred_check_branch
      %30 = sbr.rel (0) target = $region21
    $region20: #{critic_forward.1} parent=1 // pred_region
      _
    $region21: #{critic_forward.1} parent=1 // pred_fallthru
      _
    // Predicated region
    $region22: #{critic_forward.1} parent=1 // pred_check
      _
    $region23: #{critic_forward.1} parent=1 // pred_check_branch
      %32 = sbr.rel (0) target = $region25
    $region24: #{critic_forward.1} parent=1 // pred_region
      _
    $region25: #{critic_forward.1} parent=1 // pred_fallthru
      _
    // Predicated region
    $region26: #{critic_forward.1} parent=1 // pred_check
      _
    $region27: #{critic_forward.1} parent=1 // pred_check_branch
      %34 = sbr.rel (0) target = $region29
    $region28: #{critic_forward.1} parent=1 // pred_region
      _
    $region29: #{critic_forward.1} parent=1 // pred_fallthru
      _
    // Predicated region
    $region30: #{critic_forward.1} parent=1 // pred_check
      _
    $region31: #{critic_forward.1} parent=1 // pred_check_branch
      %36 = sbr.rel (0) target = $region33
    $region32: #{critic_forward.1} parent=1 // pred_region
      _
    $region33: #{critic_forward.1} parent=1 // pred_fallthru
      _
    // Predicated region
    $region34: #{critic_forward.1} parent=1 // pred_check
      _
    $region35: #{critic_forward.1} parent=1 // pred_check_branch
      %38 = sbr.rel (0) target = $region37
    $region36: #{critic_forward.1} parent=1 // pred_region
      _
    $region37: #{critic_forward.1} parent=1 // pred_fallthru
      _
    // Predicated region
    $region38: #{critic_forward.1} parent=1 // pred_check
      _
    $region39: #{critic_forward.1} parent=1 // pred_check_branch
      %40 = sbr.rel (0) target = $region41
    $region40: #{critic_forward.1} parent=1 // pred_region
      _
    $region41: #{critic_forward.1} parent=1 // pred_fallthru
      _
    // Predicated region
    $region42: #{critic_forward.1} parent=1 // pred_check
      _
    $region43: #{critic_forward.1} parent=1 // pred_check_branch
      %42 = sbr.rel (0) target = $region45
    $region44: #{critic_forward.1} parent=1 // pred_region
      _
    $region45: #{critic_forward.1} parent=1 // pred_fallthru
      _
    // Predicated region
    $region46: #{critic_forward.1} parent=1 // pred_check
      _
    $region47: #{critic_forward.1} parent=1 // pred_check_branch
      %44 = sbr.rel (0) target = $region49
    $region48: #{critic_forward.1} parent=1 // pred_region
      _
    $region49: #{critic_forward.1} parent=1 // pred_fallthru
      _
    // Predicated region
    $region50: #{critic_forward.1} parent=1 // pred_check
      _
    $region51: #{critic_forward.1} parent=1 // pred_check_branch
      %46 = sbr.rel (0) target = $region53
    $region52: #{critic_forward.1} parent=1 // pred_region
      _
    $region53: #{critic_forward.1} parent=1 // pred_fallthru
      _
    %v48 = vld [vmem:[%s2] sm:$0xf]
    %v49 = vld [vmem:[%s2 + $0x4] sm:$0xf]
    %v50 = vld [vmem:[%s2 + $0x8] sm:$0xf]
    %v51 = vld [vmem:[%s2 + $0xc] sm:$0xf]
    %v52 = vld [vmem:[%s2 + $0x10] sm:$0xf]
    %v53 = vld [vmem:[%s2 + $0x14] sm:$0xf]
    %v54 = vld [vmem:[%s2 + $0x18] sm:$0xf]
    %v55 = vld [vmem:[%s2 + $0x1c] sm:$0xf]
    %v56 = vld [vmem:[%s2 + $0x20] sm:$0xf]
    %v57 = vld [vmem:[%s2 + $0x24] sm:$0xf]
    %v58 = vld [vmem:[%s2 + $0x28] sm:$0xf]
    %v59 = vld [vmem:[%s2 + $0x2c] sm:$0xf]
    %v60 = vld [vmem:[%s2 + $0x30] sm:$0xf]
    %v61 = vld [vmem:[%s2 + $0x34] sm:$0xf]
    %v62 = vld [vmem:[%s2 + $0x38] sm:$0xf]
    %v63 = vld [vmem:[%s2 + $0x3c] sm:$0xf]
    %v64 = vld [vmem:[%s0] sm:$0xf]
    %v65 = vld [vmem:[%s0 + $0x4] sm:$0xf]
    %v66 = vld [vmem:[%s0 + $0x8] sm:$0xf]
    %v67 = vld [vmem:[%s3] sm:$0xff]
    %v68 = vld [vmem:[%s3 + $0x8] sm:$0xff]
    %v69 = vld [vmem:[%s3 + $0x10] sm:$0xff]
    %v70 = vld [vmem:[%s3 + $0x18] sm:$0xff]
    %v71 = vld [vmem:[%s3 + $0x20] sm:$0xff]
    %v72 = vld [vmem:[%s3 + $0x28] sm:$0xff]
    %v73 = vld [vmem:[%s3 + $0x30] sm:$0xff]
    %v74 = vld [vmem:[%s3 + $0x38] sm:$0xff]
    %v75 = vld [vmem:[%s3 + $0x40] sm:$0xff]
    %v76 = vld [vmem:[%s3 + $0x48] sm:$0xff]
    %v77 = vld [vmem:[%s3 + $0x50] sm:$0xff]
    %v78 = vld [vmem:[%s3 + $0x58] sm:$0xff]
    %v79 = vld [vmem:[%s3 + $0x60] sm:$0xff]
    %v80 = vld [vmem:[%s3 + $0x68] sm:$0xff]
    %v81 = vld [vmem:[%s3 + $0x70] sm:$0xff]
    %v82 = vld [vmem:[%s3 + $0x78] sm:$0xff]
    %v83 = vld [vmem:[%s1] sm:$0x3]
    %85 = vset.pattern.permute.xlu0 0
    %86 = vperm.xlu0 %85, %v67
    %v87 = vpop.permute.xlu0 %86
    %90 = vset.pattern.permute.xlu0 0
    %91 = vperm.xlu0 %90, %v68
    %v92 = vpop.permute.xlu0 %91
    %95 = vset.pattern.permute.xlu0 0
    %96 = vperm.xlu0 %95, %v69
    %v97 = vpop.permute.xlu0 %96
    %100 = vset.pattern.permute.xlu0 0
    %101 = vperm.xlu0 %100, %v70
    %v102 = vpop.permute.xlu0 %101
    %105 = vset.pattern.permute.xlu0 0
    %106 = vperm.xlu0 %105, %v71
    %v107 = vpop.permute.xlu0 %106
    %110 = vset.pattern.permute.xlu0 0
    %111 = vperm.xlu0 %110, %v72
    %v112 = vpop.permute.xlu0 %111
    %115 = vset.pattern.permute.xlu0 0
    %116 = vperm.xlu0 %115, %v73
    %v117 = vpop.permute.xlu0 %116
    %120 = vset.pattern.permute.xlu0 0
    %121 = vperm.xlu0 %120, %v74
    %v122 = vpop.permute.xlu0 %121
    %125 = vset.pattern.permute.xlu0 0
    %126 = vperm.xlu0 %125, %v75
    %v127 = vpop.permute.xlu0 %126
    %130 = vset.pattern.permute.xlu0 0
    %131 = vperm.xlu0 %130, %v76
    %v132 = vpop.permute.xlu0 %131
    %135 = vset.pattern.permute.xlu0 0
    %136 = vperm.xlu0 %135, %v77
    %v137 = vpop.permute.xlu0 %136
    %140 = vset.pattern.permute.xlu0 0
    %141 = vperm.xlu0 %140, %v78
    %v142 = vpop.permute.xlu0 %141
    %145 = vset.pattern.permute.xlu0 0
    %146 = vperm.xlu0 %145, %v79
    %v147 = vpop.permute.xlu0 %146
    %150 = vset.pattern.permute.xlu0 0
    %151 = vperm.xlu0 %150, %v80
    %v152 = vpop.permute.xlu0 %151
    %155 = vset.pattern.permute.xlu0 0
    %156 = vperm.xlu0 %155, %v81
    %v157 = vpop.permute.xlu0 %156
    %160 = vset.pattern.permute.xlu0 0
    %161 = vperm.xlu0 %160, %v82
    %v162 = vpop.permute.xlu0 %161
    %v164 = vlaneseq
    %v165 = vshrl.u32 %v164, 7
    %v166 = vsub.s32 0, %v165
    %v167 = vrot.slane %v83, %v166
    %v168 = vmul.f32 %v87, %v167
    %v169 = vmul.f32 %v92, %v167
    %v170 = vmul.f32 %v97, %v167
    %v171 = vmul.f32 %v102, %v167
    %v172 = vmul.f32 %v107, %v167
    %v173 = vmul.f32 %v112, %v167
    %v174 = vmul.f32 %v117, %v167
    %v175 = vmul.f32 %v122, %v167
    %v176 = vmul.f32 %v127, %v167
    %v177 = vmul.f32 %v132, %v167
    %v178 = vmul.f32 %v137, %v167
    %v179 = vmul.f32 %v142, %v167
    %v180 = vmul.f32 %v147, %v167
    %v181 = vmul.f32 %v152, %v167
    %v182 = vmul.f32 %v157, %v167
    %v183 = vmul.f32 %v162, %v167
    %v200 = vunpack.c.l.b16 %v48
    %v201 = vunpack.c.l.b16 %v49
    %v202 = vunpack.c.l.b16 %v50
    %v203 = vunpack.c.l.b16 %v51
    %v204 = vunpack.c.l.b16 %v52
    %v205 = vunpack.c.l.b16 %v53
    %v206 = vunpack.c.l.b16 %v54
    %v207 = vunpack.c.l.b16 %v55
    %v208 = vunpack.c.l.b16 %v56
    %v209 = vunpack.c.l.b16 %v57
    %v210 = vunpack.c.l.b16 %v58
    %v211 = vunpack.c.l.b16 %v59
    %v212 = vunpack.c.l.b16 %v60
    %v213 = vunpack.c.l.b16 %v61
    %v214 = vunpack.c.l.b16 %v62
    %v215 = vunpack.c.l.b16 %v63
    %v216 = vpack.c.b16 %v201, %v200
    %v217 = vpack.c.b16 %v203, %v202
    %v218 = vpack.c.b16 %v205, %v204
    %v219 = vpack.c.b16 %v207, %v206
    %v220 = vpack.c.b16 %v209, %v208
    %v221 = vpack.c.b16 %v211, %v210
    %v222 = vpack.c.b16 %v213, %v212
    %v223 = vpack.c.b16 %v215, %v214
    %v227 = vunpack.c.l.b16 %v64
    %v228 = vunpack.c.l.b16 %v65
    %v229 = vunpack.c.l.b16 %v66
    %v230 = vpack.c.b16 %v228, %v227
    %v231 = vpack.c.b16 %v229, %v229
    %vm233 = vcmask 195584
    %v235 = vsel %vm233, %v216, 0
    %v238 = vsel %vm233, %v217, 0
    %v241 = vsel %vm233, %v218, 0
    %v244 = vsel %vm233, %v219, 0
    %v247 = vsel %vm233, %v220, 0
    %v250 = vsel %vm233, %v221, 0
    %v253 = vsel %vm233, %v222, 0
    %v256 = vsel %vm233, %v223, 0
    %vm258 = vcmask 1043456
    %v260 = vsel %vm258, %v231, 0
    %262 = vmatprep.subr.bf16.mxu0 0
    %263 = vmatpush1.bf16.msra.mxu0 0
    %264 = vmatprep.subr.bf16.mxu0 0
    %265 = vmatpush1.bf16.msra.mxu0 0
    %266 = vmatprep.subr.bf16.mxu0 0
    %267 = vmatpush1.bf16.msra.mxu0 0
    %268 = vmatprep.subr.bf16.mxu0 0
    %269 = vmatpush1.bf16.msra.mxu0 0
    %270 = vmatprep.subr.bf16.mxu0 0
    %271 = vmatpush1.bf16.msra.mxu0 0
    %272 = vmatprep.subr.bf16.mxu0 0
    %273 = vmatpush1.bf16.msra.mxu0 0
    %274 = vmatprep.subr.bf16.mxu0 0
    %275 = vmatpush1.bf16.msra.mxu0 %v260
    %276 = vmatprep.subr.bf16.mxu0 0
    %277 = vmatpush1.bf16.msra.mxu0 %v230
    %278 = vmatprep.subr.bf16.mxu0 0
    %279 = vmatpush2.bf16.msra.mxu0 0
    %280 = vmatprep.subr.bf16.mxu0 0
    %281 = vmatpush2.bf16.msra.mxu0 0
    %282 = vmatprep.subr.bf16.mxu0 0
    %283 = vmatpush2.bf16.msra.mxu0 0
    %284 = vmatprep.subr.bf16.mxu0 0
    %285 = vmatpush2.bf16.msra.mxu0 0
    %286 = vmatprep.subr.bf16.mxu0 0
    %287 = vmatpush2.bf16.msra.mxu0 0
    %288 = vmatprep.subr.bf16.mxu0 0
    %289 = vmatpush2.bf16.msra.mxu0 0
    %290 = vmatprep.subr.bf16.mxu0 0
    %291 = vmatpush2.bf16.msra.mxu0 0
    %292 = vmatprep.subr.bf16.mxu0 0
    %293 = vmatpush2.bf16.msra.mxu0 0
    %294 = vmatprep.mubr.bf16.mxu0 0
    %295 = vmatmul.mubr.bf16.gmra.mxu0 %v235
    %v296 = vpop.f32.mrf.mxu0
    %v297 = vadd.f32 %v168, %v296
    %v298 = vpop.f32.mrf.mxu0
    %v299 = vpop.f32.mrf.mxu0
    %v300 = vadd.f32 %v169, %v299
    %v301 = vpop.f32.mrf.mxu0
    %302 = vmatprep.mubr.bf16.mxu0 0
    %303 = vmatmul.mubr.bf16.gmra.mxu0 %v238
    %v304 = vpop.f32.mrf.mxu0
    %v305 = vadd.f32 %v170, %v304
    %v306 = vpop.f32.mrf.mxu0
    %v307 = vpop.f32.mrf.mxu0
    %v308 = vadd.f32 %v171, %v307
    %v309 = vpop.f32.mrf.mxu0
    %310 = vmatprep.mubr.bf16.mxu0 0
    %311 = vmatmul.mubr.bf16.gmra.mxu0 %v241
    %v312 = vpop.f32.mrf.mxu0
    %v313 = vadd.f32 %v172, %v312
    %v314 = vpop.f32.mrf.mxu0
    %v315 = vpop.f32.mrf.mxu0
    %v316 = vadd.f32 %v173, %v315
    %v317 = vpop.f32.mrf.mxu0
    %318 = vmatprep.mubr.bf16.mxu0 0
    %319 = vmatmul.mubr.bf16.gmra.mxu0 %v244
    %v320 = vpop.f32.mrf.mxu0
    %v321 = vadd.f32 %v174, %v320
    %v322 = vpop.f32.mrf.mxu0
    %v323 = vpop.f32.mrf.mxu0
    %v324 = vadd.f32 %v175, %v323
    %v325 = vpop.f32.mrf.mxu0
    %326 = vmatprep.mubr.bf16.mxu0 0
    %327 = vmatmul.mubr.bf16.gmra.mxu0 %v247
    %v328 = vpop.f32.mrf.mxu0
    %v329 = vadd.f32 %v176, %v328
    %v330 = vpop.f32.mrf.mxu0
    %v331 = vpop.f32.mrf.mxu0
    %v332 = vadd.f32 %v177, %v331
    %v333 = vpop.f32.mrf.mxu0
    %334 = vmatprep.mubr.bf16.mxu0 0
    %335 = vmatmul.mubr.bf16.gmra.mxu0 %v250
    %v336 = vpop.f32.mrf.mxu0
    %v337 = vadd.f32 %v178, %v336
    %v338 = vpop.f32.mrf.mxu0
    %v339 = vpop.f32.mrf.mxu0
    %v340 = vadd.f32 %v179, %v339
    %v341 = vpop.f32.mrf.mxu0
    %342 = vmatprep.mubr.bf16.mxu0 0
    %343 = vmatmul.mubr.bf16.gmra.mxu0 %v253
    %v344 = vpop.f32.mrf.mxu0
    %v345 = vadd.f32 %v180, %v344
    %v346 = vpop.f32.mrf.mxu0
    %v347 = vpop.f32.mrf.mxu0
    %v348 = vadd.f32 %v181, %v347
    %v349 = vpop.f32.mrf.mxu0
    %350 = vmatprep.mubr.bf16.mxu0 0
    %351 = vmatmul.mubr.bf16.gmra.mxu0 %v256
    %v352 = vpop.f32.mrf.mxu0
    %v353 = vadd.f32 %v182, %v352
    %v354 = vpop.f32.mrf.mxu0
    %v355 = vpop.f32.mrf.mxu0
    %v356 = vadd.f32 %v183, %v355
    %v357 = vpop.f32.mrf.mxu0
    %358 = vdwg.mxu0
    %359 = vset.pattern.permute.xlu0 1
    %360 = vperm.xlu0 %359, %v67
    %v361 = vpop.permute.xlu0 %360
    %363 = vset.pattern.permute.xlu0 1
    %364 = vperm.xlu0 %363, %v68
    %v365 = vpop.permute.xlu0 %364
    %367 = vset.pattern.permute.xlu0 1
    %368 = vperm.xlu0 %367, %v69
    %v369 = vpop.permute.xlu0 %368
    %371 = vset.pattern.permute.xlu0 1
    %372 = vperm.xlu0 %371, %v70
    %v373 = vpop.permute.xlu0 %372
    %375 = vset.pattern.permute.xlu0 1
    %376 = vperm.xlu0 %375, %v71
    %v377 = vpop.permute.xlu0 %376
    %379 = vset.pattern.permute.xlu0 1
    %380 = vperm.xlu0 %379, %v72
    %v381 = vpop.permute.xlu0 %380
    %383 = vset.pattern.permute.xlu0 1
    %384 = vperm.xlu0 %383, %v73
    %v385 = vpop.permute.xlu0 %384
    %387 = vset.pattern.permute.xlu0 1
    %388 = vperm.xlu0 %387, %v74
    %v389 = vpop.permute.xlu0 %388
    %391 = vset.pattern.permute.xlu0 1
    %392 = vperm.xlu0 %391, %v75
    %v393 = vpop.permute.xlu0 %392
    %395 = vset.pattern.permute.xlu0 1
    %396 = vperm.xlu0 %395, %v76
    %v397 = vpop.permute.xlu0 %396
    %399 = vset.pattern.permute.xlu0 1
    %400 = vperm.xlu0 %399, %v77
    %v401 = vpop.permute.xlu0 %400
    %403 = vset.pattern.permute.xlu0 1
    %404 = vperm.xlu0 %403, %v78
    %v405 = vpop.permute.xlu0 %404
    %407 = vset.pattern.permute.xlu0 1
    %408 = vperm.xlu0 %407, %v79
    %v409 = vpop.permute.xlu0 %408
    %411 = vset.pattern.permute.xlu0 1
    %412 = vperm.xlu0 %411, %v80
    %v413 = vpop.permute.xlu0 %412
    %415 = vset.pattern.permute.xlu0 1
    %416 = vperm.xlu0 %415, %v81
    %v417 = vpop.permute.xlu0 %416
    %419 = vset.pattern.permute.xlu0 1
    %420 = vperm.xlu0 %419, %v82
    %v421 = vpop.permute.xlu0 %420
    %v423 = vlaneseq
    %v424 = vshrl.u32 %v423, 7
    %v425 = vsub.s32 1, %v424
    %v426 = vrot.slane %v83, %v425
    %v427 = vmul.f32 %v361, %v426
    %v428 = vmul.f32 %v365, %v426
    %v429 = vmul.f32 %v369, %v426
    %v430 = vmul.f32 %v373, %v426
    %v431 = vmul.f32 %v377, %v426
    %v432 = vmul.f32 %v381, %v426
    %v433 = vmul.f32 %v385, %v426
    %v434 = vmul.f32 %v389, %v426
    %v435 = vmul.f32 %v393, %v426
    %v436 = vmul.f32 %v397, %v426
    %v437 = vmul.f32 %v401, %v426
    %v438 = vmul.f32 %v405, %v426
    %v439 = vmul.f32 %v409, %v426
    %v440 = vmul.f32 %v413, %v426
    %v441 = vmul.f32 %v417, %v426
    %v442 = vmul.f32 %v421, %v426
    %v443 = vadd.f32 %v297, %v427
    %v444 = vadd.f32 %v300, %v428
    %v445 = vadd.f32 %v305, %v429
    %v446 = vadd.f32 %v308, %v430
    %v447 = vadd.f32 %v313, %v431
    %v448 = vadd.f32 %v316, %v432
    %v449 = vadd.f32 %v321, %v433
    %v450 = vadd.f32 %v324, %v434
    %v451 = vadd.f32 %v329, %v435
    %v452 = vadd.f32 %v332, %v436
    %v453 = vadd.f32 %v337, %v437
    %v454 = vadd.f32 %v340, %v438
    %v455 = vadd.f32 %v345, %v439
    %v456 = vadd.f32 %v348, %v440
    %v457 = vadd.f32 %v353, %v441
    %v458 = vadd.f32 %v356, %v442
    %v459 = vld [vmem:[%s4] sm:$0xff]
    %v460 = vld [vmem:[%s4 + $0x8] sm:$0xff]
    %v461 = vld [vmem:[%s4 + $0x10] sm:$0xff]
    %v462 = vld [vmem:[%s4 + $0x18] sm:$0xff]
    %v463 = vld [vmem:[%s4 + $0x20] sm:$0xff]
    %v464 = vld [vmem:[%s4 + $0x28] sm:$0xff]
    %v465 = vld [vmem:[%s4 + $0x30] sm:$0xff]
    %v466 = vld [vmem:[%s4 + $0x38] sm:$0xff]
    %v467 = vld [vmem:[%s4 + $0x40] sm:$0xff]
    %v468 = vld [vmem:[%s4 + $0x48] sm:$0xff]
    %v469 = vld [vmem:[%s4 + $0x50] sm:$0xff]
    %v470 = vld [vmem:[%s4 + $0x58] sm:$0xff]
    %v471 = vld [vmem:[%s4 + $0x60] sm:$0xff]
    %v472 = vld [vmem:[%s4 + $0x68] sm:$0xff]
    %v473 = vld [vmem:[%s4 + $0x70] sm:$0xff]
    %v474 = vld [vmem:[%s4 + $0x78] sm:$0xff]
    %476 = vset.pattern.permute.xlu0 0
    %477 = vperm.xlu0 %476, %v459
    %v478 = vpop.permute.xlu0 %477
    %481 = vset.pattern.permute.xlu0 0
    %482 = vperm.xlu0 %481, %v460
    %v483 = vpop.permute.xlu0 %482
    %486 = vset.pattern.permute.xlu0 0
    %487 = vperm.xlu0 %486, %v461
    %v488 = vpop.permute.xlu0 %487
    %491 = vset.pattern.permute.xlu0 0
    %492 = vperm.xlu0 %491, %v462
    %v493 = vpop.permute.xlu0 %492
    %496 = vset.pattern.permute.xlu0 0
    %497 = vperm.xlu0 %496, %v463
    %v498 = vpop.permute.xlu0 %497
    %501 = vset.pattern.permute.xlu0 0
    %502 = vperm.xlu0 %501, %v464
    %v503 = vpop.permute.xlu0 %502
    %506 = vset.pattern.permute.xlu0 0
    %507 = vperm.xlu0 %506, %v465
    %v508 = vpop.permute.xlu0 %507
    %511 = vset.pattern.permute.xlu0 0
    %512 = vperm.xlu0 %511, %v466
    %v513 = vpop.permute.xlu0 %512
    %516 = vset.pattern.permute.xlu0 0
    %517 = vperm.xlu0 %516, %v467
    %v518 = vpop.permute.xlu0 %517
    %521 = vset.pattern.permute.xlu0 0
    %522 = vperm.xlu0 %521, %v468
    %v523 = vpop.permute.xlu0 %522
    %526 = vset.pattern.permute.xlu0 0
    %527 = vperm.xlu0 %526, %v469
    %v528 = vpop.permute.xlu0 %527
    %531 = vset.pattern.permute.xlu0 0
    %532 = vperm.xlu0 %531, %v470
    %v533 = vpop.permute.xlu0 %532
    %536 = vset.pattern.permute.xlu0 0
    %537 = vperm.xlu0 %536, %v471
    %v538 = vpop.permute.xlu0 %537
    %541 = vset.pattern.permute.xlu0 0
    %542 = vperm.xlu0 %541, %v472
    %v543 = vpop.permute.xlu0 %542
    %546 = vset.pattern.permute.xlu0 0
    %547 = vperm.xlu0 %546, %v473
    %v548 = vpop.permute.xlu0 %547
    %551 = vset.pattern.permute.xlu0 0
    %552 = vperm.xlu0 %551, %v474
    %v553 = vpop.permute.xlu0 %552
    %v555 = vadd.f32 %v443, %v478
    %v556 = vadd.f32 %v444, %v483
    %v557 = vadd.f32 %v445, %v488
    %v558 = vadd.f32 %v446, %v493
    %v559 = vadd.f32 %v447, %v498
    %v560 = vadd.f32 %v448, %v503
    %v561 = vadd.f32 %v449, %v508
    %v562 = vadd.f32 %v450, %v513
    %v563 = vadd.f32 %v451, %v518
    %v564 = vadd.f32 %v452, %v523
    %v565 = vadd.f32 %v453, %v528
    %v566 = vadd.f32 %v454, %v533
    %v567 = vadd.f32 %v455, %v538
    %v568 = vadd.f32 %v456, %v543
    %v569 = vadd.f32 %v457, %v548
    %v570 = vadd.f32 %v458, %v553
    %v571 = vmax.f32 %v555, 0.0
    %v572 = vmax.f32 %v556, 0.0
    %v573 = vmax.f32 %v557, 0.0
    %v574 = vmax.f32 %v558, 0.0
    %v575 = vmax.f32 %v559, 0.0
    %v576 = vmax.f32 %v560, 0.0
    %v577 = vmax.f32 %v561, 0.0
    %v578 = vmax.f32 %v562, 0.0
    %v579 = vmax.f32 %v563, 0.0
    %v580 = vmax.f32 %v564, 0.0
    %v581 = vmax.f32 %v565, 0.0
    %v582 = vmax.f32 %v566, 0.0
    %v583 = vmax.f32 %v567, 0.0
    %v584 = vmax.f32 %v568, 0.0
    %v585 = vmax.f32 %v569, 0.0
    %v586 = vmax.f32 %v570, 0.0
    %vm587 = vcmask 64512
    %v588 = vsel %vm587, %v571, 0.0
    %589 = vadd.xlane.f32.xlu0 %v588
    %v590 = vpop.xlane.xlu0 %589
    %v591 = vsel %vm587, %v572, 0.0
    %592 = vadd.xlane.f32.xlu0 %v591
    %v593 = vpop.xlane.xlu0 %592
    %v594 = vsel %vm587, %v573, 0.0
    %595 = vadd.xlane.f32.xlu0 %v594
    %v596 = vpop.xlane.xlu0 %595
    %v597 = vsel %vm587, %v574, 0.0
    %598 = vadd.xlane.f32.xlu0 %v597
    %v599 = vpop.xlane.xlu0 %598
    %v600 = vsel %vm587, %v575, 0.0
    %601 = vadd.xlane.f32.xlu0 %v600
    %v602 = vpop.xlane.xlu0 %601
    %v603 = vsel %vm587, %v576, 0.0
    %604 = vadd.xlane.f32.xlu0 %v603
    %v605 = vpop.xlane.xlu0 %604
    %v606 = vsel %vm587, %v577, 0.0
    %607 = vadd.xlane.f32.xlu0 %v606
    %v608 = vpop.xlane.xlu0 %607
    %v609 = vsel %vm587, %v578, 0.0
    %610 = vadd.xlane.f32.xlu0 %v609
    %v611 = vpop.xlane.xlu0 %610
    %v612 = vsel %vm587, %v579, 0.0
    %613 = vadd.xlane.f32.xlu0 %v612
    %v614 = vpop.xlane.xlu0 %613
    %v615 = vsel %vm587, %v580, 0.0
    %616 = vadd.xlane.f32.xlu0 %v615
    %v617 = vpop.xlane.xlu0 %616
    %v618 = vsel %vm587, %v581, 0.0
    %619 = vadd.xlane.f32.xlu0 %v618
    %v620 = vpop.xlane.xlu0 %619
    %v621 = vsel %vm587, %v582, 0.0
    %622 = vadd.xlane.f32.xlu0 %v621
    %v623 = vpop.xlane.xlu0 %622
    %v624 = vsel %vm587, %v583, 0.0
    %625 = vadd.xlane.f32.xlu0 %v624
    %v626 = vpop.xlane.xlu0 %625
    %v627 = vsel %vm587, %v584, 0.0
    %628 = vadd.xlane.f32.xlu0 %v627
    %v629 = vpop.xlane.xlu0 %628
    %v630 = vsel %vm587, %v585, 0.0
    %631 = vadd.xlane.f32.xlu0 %v630
    %v632 = vpop.xlane.xlu0 %631
    %v633 = vsel %vm587, %v586, 0.0
    %634 = vadd.xlane.f32.xlu0 %v633
    %v635 = vpop.xlane.xlu0 %634
    %v636 = vmul.f32 %v590, 0.125
    %v637 = vmul.f32 %v593, 0.125
    %v638 = vmul.f32 %v596, 0.125
    %v639 = vmul.f32 %v599, 0.125
    %v640 = vmul.f32 %v602, 0.125
    %v641 = vmul.f32 %v605, 0.125
    %v642 = vmul.f32 %v608, 0.125
    %v643 = vmul.f32 %v611, 0.125
    %v644 = vmul.f32 %v614, 0.125
    %v645 = vmul.f32 %v617, 0.125
    %v646 = vmul.f32 %v620, 0.125
    %v647 = vmul.f32 %v623, 0.125
    %v648 = vmul.f32 %v626, 0.125
    %v649 = vmul.f32 %v629, 0.125
    %v650 = vmul.f32 %v632, 0.125
    %v651 = vmul.f32 %v635, 0.125
    %v652 = vmul.f32 %v571, %v571
    %v653 = vmul.f32 %v572, %v572
    %v654 = vmul.f32 %v573, %v573
    %v655 = vmul.f32 %v574, %v574
    %v656 = vmul.f32 %v575, %v575
    %v657 = vmul.f32 %v576, %v576
    %v658 = vmul.f32 %v577, %v577
    %v659 = vmul.f32 %v578, %v578
    %v660 = vmul.f32 %v579, %v579
    %v661 = vmul.f32 %v580, %v580
    %v662 = vmul.f32 %v581, %v581
    %v663 = vmul.f32 %v582, %v582
    %v664 = vmul.f32 %v583, %v583
    %v665 = vmul.f32 %v584, %v584
    %v666 = vmul.f32 %v585, %v585
    %v667 = vmul.f32 %v586, %v586
    %v668 = vsel %vm587, %v652, 0.0
    %669 = vadd.xlane.f32.xlu0 %v668
    %v670 = vpop.xlane.xlu0 %669
    %v671 = vsel %vm587, %v653, 0.0
    %672 = vadd.xlane.f32.xlu0 %v671
    %v673 = vpop.xlane.xlu0 %672
    %v674 = vsel %vm587, %v654, 0.0
    %675 = vadd.xlane.f32.xlu0 %v674
    %v676 = vpop.xlane.xlu0 %675
    %v677 = vsel %vm587, %v655, 0.0
    %678 = vadd.xlane.f32.xlu0 %v677
    %v679 = vpop.xlane.xlu0 %678
    %v680 = vsel %vm587, %v656, 0.0
    %681 = vadd.xlane.f32.xlu0 %v680
    %v682 = vpop.xlane.xlu0 %681
    %v683 = vsel %vm587, %v657, 0.0
    %684 = vadd.xlane.f32.xlu0 %v683
    %v685 = vpop.xlane.xlu0 %684
    %v686 = vsel %vm587, %v658, 0.0
    %687 = vadd.xlane.f32.xlu0 %v686
    %v688 = vpop.xlane.xlu0 %687
    %v689 = vsel %vm587, %v659, 0.0
    %690 = vadd.xlane.f32.xlu0 %v689
    %v691 = vpop.xlane.xlu0 %690
    %v692 = vsel %vm587, %v660, 0.0
    %693 = vadd.xlane.f32.xlu0 %v692
    %v694 = vpop.xlane.xlu0 %693
    %v695 = vsel %vm587, %v661, 0.0
    %696 = vadd.xlane.f32.xlu0 %v695
    %v697 = vpop.xlane.xlu0 %696
    %v698 = vsel %vm587, %v662, 0.0
    %699 = vadd.xlane.f32.xlu0 %v698
    %v700 = vpop.xlane.xlu0 %699
    %v701 = vsel %vm587, %v663, 0.0
    %702 = vadd.xlane.f32.xlu0 %v701
    %v703 = vpop.xlane.xlu0 %702
    %v704 = vsel %vm587, %v664, 0.0
    %705 = vadd.xlane.f32.xlu0 %v704
    %v706 = vpop.xlane.xlu0 %705
    %v707 = vsel %vm587, %v665, 0.0
    %708 = vadd.xlane.f32.xlu0 %v707
    %v709 = vpop.xlane.xlu0 %708
    %v710 = vsel %vm587, %v666, 0.0
    %711 = vadd.xlane.f32.xlu0 %v710
    %v712 = vpop.xlane.xlu0 %711
    %v713 = vsel %vm587, %v667, 0.0
    %714 = vadd.xlane.f32.xlu0 %v713
    %v715 = vpop.xlane.xlu0 %714
    %v716 = vmul.f32 %v670, 0.125
    %v717 = vmul.f32 %v673, 0.125
    %v718 = vmul.f32 %v676, 0.125
    %v719 = vmul.f32 %v679, 0.125
    %v720 = vmul.f32 %v682, 0.125
    %v721 = vmul.f32 %v685, 0.125
    %v722 = vmul.f32 %v688, 0.125
    %v723 = vmul.f32 %v691, 0.125
    %v724 = vmul.f32 %v694, 0.125
    %v725 = vmul.f32 %v697, 0.125
    %v726 = vmul.f32 %v700, 0.125
    %v727 = vmul.f32 %v703, 0.125
    %v728 = vmul.f32 %v706, 0.125
    %v729 = vmul.f32 %v709, 0.125
    %v730 = vmul.f32 %v712, 0.125
    %v731 = vmul.f32 %v715, 0.125
    %v732 = vmul.f32 %v636, %v636
    %v733 = vmul.f32 %v637, %v637
    %v734 = vmul.f32 %v638, %v638
    %v735 = vmul.f32 %v639, %v639
    %v736 = vmul.f32 %v640, %v640
    %v737 = vmul.f32 %v641, %v641
    %v738 = vmul.f32 %v642, %v642
    %v739 = vmul.f32 %v643, %v643
    %v740 = vmul.f32 %v644, %v644
    %v741 = vmul.f32 %v645, %v645
    %v742 = vmul.f32 %v646, %v646
    %v743 = vmul.f32 %v647, %v647
    %v744 = vmul.f32 %v648, %v648
    %v745 = vmul.f32 %v649, %v649
    %v746 = vmul.f32 %v650, %v650
    %v747 = vmul.f32 %v651, %v651
    %v748 = vsub.f32 %v716, %v732
    %v749 = vsub.f32 %v717, %v733
    %v750 = vsub.f32 %v718, %v734
    %v751 = vsub.f32 %v719, %v735
    %v752 = vsub.f32 %v720, %v736
    %v753 = vsub.f32 %v721, %v737
    %v754 = vsub.f32 %v722, %v738
    %v755 = vsub.f32 %v723, %v739
    %v756 = vsub.f32 %v724, %v740
    %v757 = vsub.f32 %v725, %v741
    %v758 = vsub.f32 %v726, %v742
    %v759 = vsub.f32 %v727, %v743
    %v760 = vsub.f32 %v728, %v744
    %v761 = vsub.f32 %v729, %v745
    %v762 = vsub.f32 %v730, %v746
    %v763 = vsub.f32 %v731, %v747
    %v764 = vmax.f32 %v748, 0.0
    %v765 = vmax.f32 %v749, 0.0
    %v766 = vmax.f32 %v750, 0.0
    %v767 = vmax.f32 %v751, 0.0
    %v768 = vmax.f32 %v752, 0.0
    %v769 = vmax.f32 %v753, 0.0
    %v770 = vmax.f32 %v754, 0.0
    %v771 = vmax.f32 %v755, 0.0
    %v772 = vmax.f32 %v756, 0.0
    %v773 = vmax.f32 %v757, 0.0
    %v774 = vmax.f32 %v758, 0.0
    %v775 = vmax.f32 %v759, 0.0
    %v776 = vmax.f32 %v760, 0.0
    %v777 = vmax.f32 %v761, 0.0
    %v778 = vmax.f32 %v762, 0.0
    %v779 = vmax.f32 %v763, 0.0
    %v780 = vld [vmem:[%s5] sm:$0xff]
    %v781 = vld [vmem:[%s5 + $0x8] sm:$0xff]
    %v782 = vld [vmem:[%s5 + $0x10] sm:$0xff]
    %v783 = vld [vmem:[%s5 + $0x18] sm:$0xff]
    %v784 = vld [vmem:[%s5 + $0x20] sm:$0xff]
    %v785 = vld [vmem:[%s5 + $0x28] sm:$0xff]
    %v786 = vld [vmem:[%s5 + $0x30] sm:$0xff]
    %v787 = vld [vmem:[%s5 + $0x38] sm:$0xff]
    %v788 = vld [vmem:[%s5 + $0x40] sm:$0xff]
    %v789 = vld [vmem:[%s5 + $0x48] sm:$0xff]
    %v790 = vld [vmem:[%s5 + $0x50] sm:$0xff]
    %v791 = vld [vmem:[%s5 + $0x58] sm:$0xff]
    %v792 = vld [vmem:[%s5 + $0x60] sm:$0xff]
    %v793 = vld [vmem:[%s5 + $0x68] sm:$0xff]
    %v794 = vld [vmem:[%s5 + $0x70] sm:$0xff]
    %v795 = vld [vmem:[%s5 + $0x78] sm:$0xff]
    %v796 = vadd.f32 %v764, 1e-05
    %v797 = vadd.f32 %v765, 1e-05
    %v798 = vadd.f32 %v766, 1e-05
    %v799 = vadd.f32 %v767, 1e-05
    %v800 = vadd.f32 %v768, 1e-05
    %v801 = vadd.f32 %v769, 1e-05
    %v802 = vadd.f32 %v770, 1e-05
    %v803 = vadd.f32 %v771, 1e-05
    %v804 = vadd.f32 %v772, 1e-05
    %v805 = vadd.f32 %v773, 1e-05
    %v806 = vadd.f32 %v774, 1e-05
    %v807 = vadd.f32 %v775, 1e-05
    %v808 = vadd.f32 %v776, 1e-05
    %v809 = vadd.f32 %v777, 1e-05
    %v810 = vadd.f32 %v778, 1e-05
    %v811 = vadd.f32 %v779, 1e-05
    %v812 = vrsqrt.pop %v796
    %v813 = vrsqrt.pop %v797
    %v814 = vrsqrt.pop %v798
    %v815 = vrsqrt.pop %v799
    %v816 = vrsqrt.pop %v800
    %v817 = vrsqrt.pop %v801
    %v818 = vrsqrt.pop %v802
    %v819 = vrsqrt.pop %v803
    %v820 = vrsqrt.pop %v804
    %v821 = vrsqrt.pop %v805
    %v822 = vrsqrt.pop %v806
    %v823 = vrsqrt.pop %v807
    %v824 = vrsqrt.pop %v808
    %v825 = vrsqrt.pop %v809
    %v826 = vrsqrt.pop %v810
    %v827 = vrsqrt.pop %v811
    %v828 = vmul.f32 %v780, %v812
    %v829 = vmul.f32 %v781, %v813
    %v830 = vmul.f32 %v782, %v814
    %v831 = vmul.f32 %v783, %v815
    %v832 = vmul.f32 %v784, %v816
    %v833 = vmul.f32 %v785, %v817
    %v834 = vmul.f32 %v786, %v818
    %v835 = vmul.f32 %v787, %v819
    %v836 = vmul.f32 %v788, %v820
    %v837 = vmul.f32 %v789, %v821
    %v838 = vmul.f32 %v790, %v822
    %v839 = vmul.f32 %v791, %v823
    %v840 = vmul.f32 %v792, %v824
    %v841 = vmul.f32 %v793, %v825
    %v842 = vmul.f32 %v794, %v826
    %v843 = vmul.f32 %v795, %v827
    %v844 = vld [vmem:[%s6] sm:$0xff]
    %v845 = vld [vmem:[%s6 + $0x8] sm:$0xff]
    %v846 = vld [vmem:[%s6 + $0x10] sm:$0xff]
    %v847 = vld [vmem:[%s6 + $0x18] sm:$0xff]
    %v848 = vld [vmem:[%s6 + $0x20] sm:$0xff]
    %v849 = vld [vmem:[%s6 + $0x28] sm:$0xff]
    %v850 = vld [vmem:[%s6 + $0x30] sm:$0xff]
    %v851 = vld [vmem:[%s6 + $0x38] sm:$0xff]
    %v852 = vld [vmem:[%s6 + $0x40] sm:$0xff]
    %v853 = vld [vmem:[%s6 + $0x48] sm:$0xff]
    %v854 = vld [vmem:[%s6 + $0x50] sm:$0xff]
    %v855 = vld [vmem:[%s6 + $0x58] sm:$0xff]
    %v856 = vld [vmem:[%s6 + $0x60] sm:$0xff]
    %v857 = vld [vmem:[%s6 + $0x68] sm:$0xff]
    %v858 = vld [vmem:[%s6 + $0x70] sm:$0xff]
    %v859 = vld [vmem:[%s6 + $0x78] sm:$0xff]
    %v860 = vmul.f32 %v636, %v828
    %v861 = vmul.f32 %v637, %v829
    %v862 = vmul.f32 %v638, %v830
    %v863 = vmul.f32 %v639, %v831
    %v864 = vmul.f32 %v640, %v832
    %v865 = vmul.f32 %v641, %v833
    %v866 = vmul.f32 %v642, %v834
    %v867 = vmul.f32 %v643, %v835
    %v868 = vmul.f32 %v644, %v836
    %v869 = vmul.f32 %v645, %v837
    %v870 = vmul.f32 %v646, %v838
    %v871 = vmul.f32 %v647, %v839
    %v872 = vmul.f32 %v648, %v840
    %v873 = vmul.f32 %v649, %v841
    %v874 = vmul.f32 %v650, %v842
    %v875 = vmul.f32 %v651, %v843
    %v876 = vsub.f32 %v844, %v860
    %v877 = vsub.f32 %v845, %v861
    %v878 = vsub.f32 %v846, %v862
    %v879 = vsub.f32 %v847, %v863
    %v880 = vsub.f32 %v848, %v864
    %v881 = vsub.f32 %v849, %v865
    %v882 = vsub.f32 %v850, %v866
    %v883 = vsub.f32 %v851, %v867
    %v884 = vsub.f32 %v852, %v868
    %v885 = vsub.f32 %v853, %v869
    %v886 = vsub.f32 %v854, %v870
    %v887 = vsub.f32 %v855, %v871
    %v888 = vsub.f32 %v856, %v872
    %v889 = vsub.f32 %v857, %v873
    %v890 = vsub.f32 %v858, %v874
    %v891 = vsub.f32 %v859, %v875
    %893 = vset.pattern.permute.xlu0 0
    %894 = vperm.xlu0 %893, %v828
    %v895 = vpop.permute.xlu0 %894
    %898 = vset.pattern.permute.xlu0 0
    %899 = vperm.xlu0 %898, %v829
    %v900 = vpop.permute.xlu0 %899
    %903 = vset.pattern.permute.xlu0 0
    %904 = vperm.xlu0 %903, %v830
    %v905 = vpop.permute.xlu0 %904
    %908 = vset.pattern.permute.xlu0 0
    %909 = vperm.xlu0 %908, %v831
    %v910 = vpop.permute.xlu0 %909
    %913 = vset.pattern.permute.xlu0 0
    %914 = vperm.xlu0 %913, %v832
    %v915 = vpop.permute.xlu0 %914
    %918 = vset.pattern.permute.xlu0 0
    %919 = vperm.xlu0 %918, %v833
    %v920 = vpop.permute.xlu0 %919
    %923 = vset.pattern.permute.xlu0 0
    %924 = vperm.xlu0 %923, %v834
    %v925 = vpop.permute.xlu0 %924
    %928 = vset.pattern.permute.xlu0 0
    %929 = vperm.xlu0 %928, %v835
    %v930 = vpop.permute.xlu0 %929
    %933 = vset.pattern.permute.xlu0 0
    %934 = vperm.xlu0 %933, %v836
    %v935 = vpop.permute.xlu0 %934
    %938 = vset.pattern.permute.xlu0 0
    %939 = vperm.xlu0 %938, %v837
    %v940 = vpop.permute.xlu0 %939
    %943 = vset.pattern.permute.xlu0 0
    %944 = vperm.xlu0 %943, %v838
    %v945 = vpop.permute.xlu0 %944
    %948 = vset.pattern.permute.xlu0 0
    %949 = vperm.xlu0 %948, %v839
    %v950 = vpop.permute.xlu0 %949
    %953 = vset.pattern.permute.xlu0 0
    %954 = vperm.xlu0 %953, %v840
    %v955 = vpop.permute.xlu0 %954
    %958 = vset.pattern.permute.xlu0 0
    %959 = vperm.xlu0 %958, %v841
    %v960 = vpop.permute.xlu0 %959
    %963 = vset.pattern.permute.xlu0 0
    %964 = vperm.xlu0 %963, %v842
    %v965 = vpop.permute.xlu0 %964
    %968 = vset.pattern.permute.xlu0 0
    %969 = vperm.xlu0 %968, %v843
    %v970 = vpop.permute.xlu0 %969
    %v972 = vmul.f32 %v571, %v895
    %v973 = vmul.f32 %v572, %v900
    %v974 = vmul.f32 %v573, %v905
    %v975 = vmul.f32 %v574, %v910
    %v976 = vmul.f32 %v575, %v915
    %v977 = vmul.f32 %v576, %v920
    %v978 = vmul.f32 %v577, %v925
    %v979 = vmul.f32 %v578, %v930
    %v980 = vmul.f32 %v579, %v935
    %v981 = vmul.f32 %v580, %v940
    %v982 = vmul.f32 %v581, %v945
    %v983 = vmul.f32 %v582, %v950
    %v984 = vmul.f32 %v583, %v955
    %v985 = vmul.f32 %v584, %v960
    %v986 = vmul.f32 %v585, %v965
    %v987 = vmul.f32 %v586, %v970
    %989 = vset.pattern.permute.xlu0 0
    %990 = vperm.xlu0 %989, %v876
    %v991 = vpop.permute.xlu0 %990
    %994 = vset.pattern.permute.xlu0 0
    %995 = vperm.xlu0 %994, %v877
    %v996 = vpop.permute.xlu0 %995
    %999 = vset.pattern.permute.xlu0 0
    %1000 = vperm.xlu0 %999, %v878
    %v1001 = vpop.permute.xlu0 %1000
    %1004 = vset.pattern.permute.xlu0 0
    %1005 = vperm.xlu0 %1004, %v879
    %v1006 = vpop.permute.xlu0 %1005
    %1009 = vset.pattern.permute.xlu0 0
    %1010 = vperm.xlu0 %1009, %v880
    %v1011 = vpop.permute.xlu0 %1010
    %1014 = vset.pattern.permute.xlu0 0
    %1015 = vperm.xlu0 %1014, %v881
    %v1016 = vpop.permute.xlu0 %1015
    %1019 = vset.pattern.permute.xlu0 0
    %1020 = vperm.xlu0 %1019, %v882
    %v1021 = vpop.permute.xlu0 %1020
    %1024 = vset.pattern.permute.xlu0 0
    %1025 = vperm.xlu0 %1024, %v883
    %v1026 = vpop.permute.xlu0 %1025
    %1029 = vset.pattern.permute.xlu0 0
    %1030 = vperm.xlu0 %1029, %v884
    %v1031 = vpop.permute.xlu0 %1030
    %1034 = vset.pattern.permute.xlu0 0
    %1035 = vperm.xlu0 %1034, %v885
    %v1036 = vpop.permute.xlu0 %1035
    %1039 = vset.pattern.permute.xlu0 0
    %1040 = vperm.xlu0 %1039, %v886
    %v1041 = vpop.permute.xlu0 %1040
    %1044 = vset.pattern.permute.xlu0 0
    %1045 = vperm.xlu0 %1044, %v887
    %v1046 = vpop.permute.xlu0 %1045
    %1049 = vset.pattern.permute.xlu0 0
    %1050 = vperm.xlu0 %1049, %v888
    %v1051 = vpop.permute.xlu0 %1050
    %1054 = vset.pattern.permute.xlu0 0
    %1055 = vperm.xlu0 %1054, %v889
    %v1056 = vpop.permute.xlu0 %1055
    %1059 = vset.pattern.permute.xlu0 0
    %1060 = vperm.xlu0 %1059, %v890
    %v1061 = vpop.permute.xlu0 %1060
    %1064 = vset.pattern.permute.xlu0 0
    %1065 = vperm.xlu0 %1064, %v891
    %v1066 = vpop.permute.xlu0 %1065
    %v1068 = vadd.f32 %v972, %v991
    %v1069 = vadd.f32 %v973, %v996
    %v1070 = vadd.f32 %v974, %v1001
    %v1071 = vadd.f32 %v975, %v1006
    %v1072 = vadd.f32 %v976, %v1011
    %v1073 = vadd.f32 %v977, %v1016
    %v1074 = vadd.f32 %v978, %v1021
    %v1075 = vadd.f32 %v979, %v1026
    %v1076 = vadd.f32 %v980, %v1031
    %v1077 = vadd.f32 %v981, %v1036
    %v1078 = vadd.f32 %v982, %v1041
    %v1079 = vadd.f32 %v983, %v1046
    %v1080 = vadd.f32 %v984, %v1051
    %v1081 = vadd.f32 %v985, %v1056
    %v1082 = vadd.f32 %v986, %v1061
    %v1083 = vadd.f32 %v987, %v1066
    %v1084 = vmax.f32 %v1068, 0.0
    %v1085 = vmax.f32 %v1069, 0.0
    %v1086 = vmax.f32 %v1070, 0.0
    %v1087 = vmax.f32 %v1071, 0.0
    %v1088 = vmax.f32 %v1072, 0.0
    %v1089 = vmax.f32 %v1073, 0.0
    %v1090 = vmax.f32 %v1074, 0.0
    %v1091 = vmax.f32 %v1075, 0.0
    %v1092 = vmax.f32 %v1076, 0.0
    %v1093 = vmax.f32 %v1077, 0.0
    %v1094 = vmax.f32 %v1078, 0.0
    %v1095 = vmax.f32 %v1079, 0.0
    %v1096 = vmax.f32 %v1080, 0.0
    %v1097 = vmax.f32 %v1081, 0.0
    %v1098 = vmax.f32 %v1082, 0.0
    %v1099 = vmax.f32 %v1083, 0.0
    %v1100 = vld [vmem:[%s7] sm:$0xf]
    %v1101 = vld [vmem:[%s7 + $0x4] sm:$0xf]
    %v1102 = vld [vmem:[%s7 + $0x8] sm:$0xf]
    %v1103 = vld [vmem:[%s7 + $0xc] sm:$0xf]
    %v1104 = vld [vmem:[%s7 + $0x10] sm:$0xf]
    %v1105 = vld [vmem:[%s7 + $0x14] sm:$0xf]
    %v1106 = vld [vmem:[%s7 + $0x18] sm:$0xf]
    %v1107 = vld [vmem:[%s7 + $0x1c] sm:$0xf]
    %v1108 = vld [vmem:[%s7 + $0x20] sm:$0xf]
    %v1109 = vld [vmem:[%s7 + $0x24] sm:$0xf]
    %v1110 = vld [vmem:[%s7 + $0x28] sm:$0xf]
    %v1111 = vld [vmem:[%s7 + $0x2c] sm:$0xf]
    %v1112 = vld [vmem:[%s7 + $0x30] sm:$0xf]
    %v1113 = vld [vmem:[%s7 + $0x34] sm:$0xf]
    %v1114 = vld [vmem:[%s7 + $0x38] sm:$0xf]
    %v1115 = vld [vmem:[%s7 + $0x3c] sm:$0xf]
    %v1116 = vld [vmem:[%s7 + $0x40] sm:$0xf]
    %v1117 = vld [vmem:[%s7 + $0x44] sm:$0xf]
    %v1118 = vld [vmem:[%s7 + $0x48] sm:$0xf]
    %v1119 = vld [vmem:[%s7 + $0x4c] sm:$0xf]
    %v1120 = vld [vmem:[%s7 + $0x50] sm:$0xf]
    %v1121 = vld [vmem:[%s7 + $0x54] sm:$0xf]
    %v1122 = vld [vmem:[%s7 + $0x58] sm:$0xf]
    %v1123 = vld [vmem:[%s7 + $0x5c] sm:$0xf]
    %v1124 = vld [vmem:[%s7 + $0x60] sm:$0xf]
    %v1125 = vld [vmem:[%s7 + $0x64] sm:$0xf]
    %v1126 = vld [vmem:[%s7 + $0x68] sm:$0xf]
    %v1127 = vld [vmem:[%s7 + $0x6c] sm:$0xf]
    %v1128 = vld [vmem:[%s7 + $0x70] sm:$0xf]
    %v1129 = vld [vmem:[%s7 + $0x74] sm:$0xf]
    %v1130 = vld [vmem:[%s7 + $0x78] sm:$0xf]
    %v1131 = vld [vmem:[%s7 + $0x7c] sm:$0xf]
    %v1132 = vpack.c.bf16 %v1085, %v1084
    %v1133 = vpack.c.bf16 %v1087, %v1086
    %v1134 = vpack.c.bf16 %v1089, %v1088
    %v1135 = vpack.c.bf16 %v1091, %v1090
    %v1136 = vpack.c.bf16 %v1093, %v1092
    %v1137 = vpack.c.bf16 %v1095, %v1094
    %v1138 = vpack.c.bf16 %v1097, %v1096
    %v1139 = vpack.c.bf16 %v1099, %v1098
    %v1140 = vld [vmem:[%s8] sm:$0xff]
    %v1141 = vld [vmem:[%s8 + $0x8] sm:$0xff]
    %v1142 = vld [vmem:[%s8 + $0x10] sm:$0xff]
    %v1143 = vld [vmem:[%s8 + $0x18] sm:$0xff]
    %v1144 = vld [vmem:[%s8 + $0x20] sm:$0xff]
    %v1145 = vld [vmem:[%s8 + $0x28] sm:$0xff]
    %v1146 = vld [vmem:[%s8 + $0x30] sm:$0xff]
    %v1147 = vld [vmem:[%s8 + $0x38] sm:$0xff]
    %v1148 = vld [vmem:[%s8 + $0x40] sm:$0xff]
    %v1149 = vld [vmem:[%s8 + $0x48] sm:$0xff]
    %v1150 = vld [vmem:[%s8 + $0x50] sm:$0xff]
    %v1151 = vld [vmem:[%s8 + $0x58] sm:$0xff]
    %v1152 = vld [vmem:[%s8 + $0x60] sm:$0xff]
    %v1153 = vld [vmem:[%s8 + $0x68] sm:$0xff]
    %v1154 = vld [vmem:[%s8 + $0x70] sm:$0xff]
    %v1155 = vld [vmem:[%s8 + $0x78] sm:$0xff]
    %v1156 = vld [vmem:[%s8 + $0x80] sm:$0xff]
    %v1157 = vld [vmem:[%s8 + $0x88] sm:$0xff]
    %v1158 = vld [vmem:[%s8 + $0x90] sm:$0xff]
    %v1159 = vld [vmem:[%s8 + $0x98] sm:$0xff]
    %v1160 = vld [vmem:[%s8 + $0xa0] sm:$0xff]
    %v1161 = vld [vmem:[%s8 + $0xa8] sm:$0xff]
    %v1162 = vld [vmem:[%s8 + $0xb0] sm:$0xff]
    %v1163 = vld [vmem:[%s8 + $0xb8] sm:$0xff]
    %v1164 = vld [vmem:[%s8 + $0xc0] sm:$0xff]
    %v1165 = vld [vmem:[%s8 + $0xc8] sm:$0xff]
    %v1166 = vld [vmem:[%s8 + $0xd0] sm:$0xff]
    %v1167 = vld [vmem:[%s8 + $0xd8] sm:$0xff]
    %v1168 = vld [vmem:[%s8 + $0xe0] sm:$0xff]
    %v1169 = vld [vmem:[%s8 + $0xe8] sm:$0xff]
    %v1170 = vld [vmem:[%s8 + $0xf0] sm:$0xff]
    %v1171 = vld [vmem:[%s8 + $0xf8] sm:$0xff]
    %1173 = vset.pattern.permute.xlu0 0
    %1174 = vperm.xlu0 %1173, %v1140
    %v1175 = vpop.permute.xlu0 %1174
    %1178 = vset.pattern.permute.xlu0 0
    %1179 = vperm.xlu0 %1178, %v1141
    %v1180 = vpop.permute.xlu0 %1179
    %1183 = vset.pattern.permute.xlu0 0
    %1184 = vperm.xlu0 %1183, %v1142
    %v1185 = vpop.permute.xlu0 %1184
    %1188 = vset.pattern.permute.xlu0 0
    %1189 = vperm.xlu0 %1188, %v1143
    %v1190 = vpop.permute.xlu0 %1189
    %1193 = vset.pattern.permute.xlu0 0
    %1194 = vperm.xlu0 %1193, %v1144
    %v1195 = vpop.permute.xlu0 %1194
    %1198 = vset.pattern.permute.xlu0 0
    %1199 = vperm.xlu0 %1198, %v1145
    %v1200 = vpop.permute.xlu0 %1199
    %1203 = vset.pattern.permute.xlu0 0
    %1204 = vperm.xlu0 %1203, %v1146
    %v1205 = vpop.permute.xlu0 %1204
    %1208 = vset.pattern.permute.xlu0 0
    %1209 = vperm.xlu0 %1208, %v1147
    %v1210 = vpop.permute.xlu0 %1209
    %1213 = vset.pattern.permute.xlu0 0
    %1214 = vperm.xlu0 %1213, %v1148
    %v1215 = vpop.permute.xlu0 %1214
    %1218 = vset.pattern.permute.xlu0 0
    %1219 = vperm.xlu0 %1218, %v1149
    %v1220 = vpop.permute.xlu0 %1219
    %1223 = vset.pattern.permute.xlu0 0
    %1224 = vperm.xlu0 %1223, %v1150
    %v1225 = vpop.permute.xlu0 %1224
    %1228 = vset.pattern.permute.xlu0 0
    %1229 = vperm.xlu0 %1228, %v1151
    %v1230 = vpop.permute.xlu0 %1229
    %1233 = vset.pattern.permute.xlu0 0
    %1234 = vperm.xlu0 %1233, %v1152
    %v1235 = vpop.permute.xlu0 %1234
    %1238 = vset.pattern.permute.xlu0 0
    %1239 = vperm.xlu0 %1238, %v1153
    %v1240 = vpop.permute.xlu0 %1239
    %1243 = vset.pattern.permute.xlu0 0
    %1244 = vperm.xlu0 %1243, %v1154
    %v1245 = vpop.permute.xlu0 %1244
    %1248 = vset.pattern.permute.xlu0 0
    %1249 = vperm.xlu0 %1248, %v1155
    %v1250 = vpop.permute.xlu0 %1249
    %1253 = vset.pattern.permute.xlu0 0
    %1254 = vperm.xlu0 %1253, %v1156
    %v1255 = vpop.permute.xlu0 %1254
    %1258 = vset.pattern.permute.xlu0 0
    %1259 = vperm.xlu0 %1258, %v1157
    %v1260 = vpop.permute.xlu0 %1259
    %1263 = vset.pattern.permute.xlu0 0
    %1264 = vperm.xlu0 %1263, %v1158
    %v1265 = vpop.permute.xlu0 %1264
    %1268 = vset.pattern.permute.xlu0 0
    %1269 = vperm.xlu0 %1268, %v1159
    %v1270 = vpop.permute.xlu0 %1269
    %1273 = vset.pattern.permute.xlu0 0
    %1274 = vperm.xlu0 %1273, %v1160
    %v1275 = vpop.permute.xlu0 %1274
    %1278 = vset.pattern.permute.xlu0 0
    %1279 = vperm.xlu0 %1278, %v1161
    %v1280 = vpop.permute.xlu0 %1279
    %1283 = vset.pattern.permute.xlu0 0
    %1284 = vperm.xlu0 %1283, %v1162
    %v1285 = vpop.permute.xlu0 %1284
    %1288 = vset.pattern.permute.xlu0 0
    %1289 = vperm.xlu0 %1288, %v1163
    %v1290 = vpop.permute.xlu0 %1289
    %1293 = vset.pattern.permute.xlu0 0
    %1294 = vperm.xlu0 %1293, %v1164
    %v1295 = vpop.permute.xlu0 %1294
    %1298 = vset.pattern.permute.xlu0 0
    %1299 = vperm.xlu0 %1298, %v1165
    %v1300 = vpop.permute.xlu0 %1299
    %1303 = vset.pattern.permute.xlu0 0
    %1304 = vperm.xlu0 %1303, %v1166
    %v1305 = vpop.permute.xlu0 %1304
    %1308 = vset.pattern.permute.xlu0 0
    %1309 = vperm.xlu0 %1308, %v1167
    %v1310 = vpop.permute.xlu0 %1309
    %1313 = vset.pattern.permute.xlu0 0
    %1314 = vperm.xlu0 %1313, %v1168
    %v1315 = vpop.permute.xlu0 %1314
    %1318 = vset.pattern.permute.xlu0 0
    %1319 = vperm.xlu0 %1318, %v1169
    %v1320 = vpop.permute.xlu0 %1319
    %1323 = vset.pattern.permute.xlu0 0
    %1324 = vperm.xlu0 %1323, %v1170
    %v1325 = vpop.permute.xlu0 %1324
    %1328 = vset.pattern.permute.xlu0 0
    %1329 = vperm.xlu0 %1328, %v1171
    %v1330 = vpop.permute.xlu0 %1329
    %v1364 = vunpack.c.l.b16 %v1100
    %v1365 = vunpack.c.l.b16 %v1101
    %v1366 = vunpack.c.l.b16 %v1102
    %v1367 = vunpack.c.l.b16 %v1103
    %v1368 = vunpack.c.l.b16 %v1104
    %v1369 = vunpack.c.l.b16 %v1105
    %v1370 = vunpack.c.l.b16 %v1106
    %v1371 = vunpack.c.l.b16 %v1107
    %v1372 = vunpack.c.l.b16 %v1108
    %v1373 = vunpack.c.l.b16 %v1109
    %v1374 = vunpack.c.l.b16 %v1110
    %v1375 = vunpack.c.l.b16 %v1111
    %v1376 = vunpack.c.l.b16 %v1112
    %v1377 = vunpack.c.l.b16 %v1113
    %v1378 = vunpack.c.l.b16 %v1114
    %v1379 = vunpack.c.l.b16 %v1115
    %v1380 = vunpack.c.l.b16 %v1116
    %v1381 = vunpack.c.l.b16 %v1117
    %v1382 = vunpack.c.l.b16 %v1118
    %v1383 = vunpack.c.l.b16 %v1119
    %v1384 = vunpack.c.l.b16 %v1120
    %v1385 = vunpack.c.l.b16 %v1121
    %v1386 = vunpack.c.l.b16 %v1122
    %v1387 = vunpack.c.l.b16 %v1123
    %v1388 = vunpack.c.l.b16 %v1124
    %v1389 = vunpack.c.l.b16 %v1125
    %v1390 = vunpack.c.l.b16 %v1126
    %v1391 = vunpack.c.l.b16 %v1127
    %v1392 = vunpack.c.l.b16 %v1128
    %v1393 = vunpack.c.l.b16 %v1129
    %v1394 = vunpack.c.l.b16 %v1130
    %v1395 = vunpack.c.l.b16 %v1131
    %v1396 = vpack.c.b16 %v1365, %v1364
    %v1397 = vpack.c.b16 %v1367, %v1366
    %v1398 = vpack.c.b16 %v1369, %v1368
    %v1399 = vpack.c.b16 %v1371, %v1370
    %v1400 = vpack.c.b16 %v1373, %v1372
    %v1401 = vpack.c.b16 %v1375, %v1374
    %v1402 = vpack.c.b16 %v1377, %v1376
    %v1403 = vpack.c.b16 %v1379, %v1378
    %v1404 = vpack.c.b16 %v1381, %v1380
    %v1405 = vpack.c.b16 %v1383, %v1382
    %v1406 = vpack.c.b16 %v1385, %v1384
    %v1407 = vpack.c.b16 %v1387, %v1386
    %v1408 = vpack.c.b16 %v1389, %v1388
    %v1409 = vpack.c.b16 %v1391, %v1390
    %v1410 = vpack.c.b16 %v1393, %v1392
    %v1411 = vpack.c.b16 %v1395, %v1394
    %1428 = vmatprep.subr.bf16.mxu0 0
    %1429 = vmatpush1.bf16.msra.mxu0 %v1139
    %1430 = vmatprep.subr.bf16.mxu0 0
    %1431 = vmatpush1.bf16.msra.mxu0 %v1138
    %1432 = vmatprep.subr.bf16.mxu0 0
    %1433 = vmatpush1.bf16.msra.mxu0 %v1137
    %1434 = vmatprep.subr.bf16.mxu0 0
    %1435 = vmatpush1.bf16.msra.mxu0 %v1136
    %1436 = vmatprep.subr.bf16.mxu0 0
    %1437 = vmatpush1.bf16.msra.mxu0 %v1135
    %1438 = vmatprep.subr.bf16.mxu0 0
    %1439 = vmatpush1.bf16.msra.mxu0 %v1134
    %1440 = vmatprep.subr.bf16.mxu0 0
    %1441 = vmatpush1.bf16.msra.mxu0 %v1133
    %1442 = vmatprep.subr.bf16.mxu0 0
    %1443 = vmatpush1.bf16.msra.mxu0 %v1132
    %1444 = vmatprep.subr.bf16.mxu0 0
    %1445 = vmatpush2.bf16.msra.mxu0 0
    %1446 = vmatprep.subr.bf16.mxu0 0
    %1447 = vmatpush2.bf16.msra.mxu0 0
    %1448 = vmatprep.subr.bf16.mxu0 0
    %1449 = vmatpush2.bf16.msra.mxu0 0
    %1450 = vmatprep.subr.bf16.mxu0 0
    %1451 = vmatpush2.bf16.msra.mxu0 0
    %1452 = vmatprep.subr.bf16.mxu0 0
    %1453 = vmatpush2.bf16.msra.mxu0 0
    %1454 = vmatprep.subr.bf16.mxu0 0
    %1455 = vmatpush2.bf16.msra.mxu0 0
    %1456 = vmatprep.subr.bf16.mxu0 0
    %1457 = vmatpush2.bf16.msra.mxu0 0
    %1458 = vmatprep.subr.bf16.mxu0 0
    %1459 = vmatpush2.bf16.msra.mxu0 0
    %1460 = vmatprep.mubr.bf16.mxu0 0
    %1461 = vmatmul.mubr.bf16.gmra.mxu0 %v1396
    %v1462 = vpop.f32.mrf.mxu0
    %v1463 = vadd.f32 %v1175, %v1462
    %v1464 = vpop.f32.mrf.mxu0
    %v1465 = vpop.f32.mrf.mxu0
    %v1466 = vadd.f32 %v1180, %v1465
    %v1467 = vpop.f32.mrf.mxu0
    %1468 = vmatprep.mubr.bf16.mxu0 0
    %1469 = vmatmul.mubr.bf16.gmra.mxu0 %v1397
    %v1470 = vpop.f32.mrf.mxu0
    %v1471 = vadd.f32 %v1185, %v1470
    %v1472 = vpop.f32.mrf.mxu0
    %v1473 = vpop.f32.mrf.mxu0
    %v1474 = vadd.f32 %v1190, %v1473
    %v1475 = vpop.f32.mrf.mxu0
    %1476 = vmatprep.mubr.bf16.mxu0 0
    %1477 = vmatmul.mubr.bf16.gmra.mxu0 %v1398
    %v1478 = vpop.f32.mrf.mxu0
    %v1479 = vadd.f32 %v1195, %v1478
    %v1480 = vpop.f32.mrf.mxu0
    %v1481 = vpop.f32.mrf.mxu0
    %v1482 = vadd.f32 %v1200, %v1481
    %v1483 = vpop.f32.mrf.mxu0
    %1484 = vmatprep.mubr.bf16.mxu0 0
    %1485 = vmatmul.mubr.bf16.gmra.mxu0 %v1399
    %v1486 = vpop.f32.mrf.mxu0
    %v1487 = vadd.f32 %v1205, %v1486
    %v1488 = vpop.f32.mrf.mxu0
    %v1489 = vpop.f32.mrf.mxu0
    %v1490 = vadd.f32 %v1210, %v1489
    %v1491 = vpop.f32.mrf.mxu0
    %1492 = vmatprep.mubr.bf16.mxu0 0
    %1493 = vmatmul.mubr.bf16.gmra.mxu0 %v1400
    %v1494 = vpop.f32.mrf.mxu0
    %v1495 = vadd.f32 %v1215, %v1494
    %v1496 = vpop.f32.mrf.mxu0
    %v1497 = vpop.f32.mrf.mxu0
    %v1498 = vadd.f32 %v1220, %v1497
    %v1499 = vpop.f32.mrf.mxu0
    %1500 = vmatprep.mubr.bf16.mxu0 0
    %1501 = vmatmul.mubr.bf16.gmra.mxu0 %v1401
    %v1502 = vpop.f32.mrf.mxu0
    %v1503 = vadd.f32 %v1225, %v1502
    %v1504 = vpop.f32.mrf.mxu0
    %v1505 = vpop.f32.mrf.mxu0
    %v1506 = vadd.f32 %v1230, %v1505
    %v1507 = vpop.f32.mrf.mxu0
    %1508 = vmatprep.mubr.bf16.mxu0 0
    %1509 = vmatmul.mubr.bf16.gmra.mxu0 %v1402
    %v1510 = vpop.f32.mrf.mxu0
    %v1511 = vadd.f32 %v1235, %v1510
    %v1512 = vpop.f32.mrf.mxu0
    %v1513 = vpop.f32.mrf.mxu0
    %v1514 = vadd.f32 %v1240, %v1513
    %v1515 = vpop.f32.mrf.mxu0
    %1516 = vmatprep.mubr.bf16.mxu0 0
    %1517 = vmatmul.mubr.bf16.gmra.mxu0 %v1403
    %v1518 = vpop.f32.mrf.mxu0
    %v1519 = vadd.f32 %v1245, %v1518
    %v1520 = vpop.f32.mrf.mxu0
    %v1521 = vpop.f32.mrf.mxu0
    %v1522 = vadd.f32 %v1250, %v1521
    %v1523 = vpop.f32.mrf.mxu0
    %1524 = vmatprep.mubr.bf16.mxu0 0
    %1525 = vmatmul.mubr.bf16.gmra.mxu0 %v1404
    %v1526 = vpop.f32.mrf.mxu0
    %v1527 = vadd.f32 %v1255, %v1526
    %v1528 = vpop.f32.mrf.mxu0
    %v1529 = vpop.f32.mrf.mxu0
    %v1530 = vadd.f32 %v1260, %v1529
    %v1531 = vpop.f32.mrf.mxu0
    %1532 = vmatprep.mubr.bf16.mxu0 0
    %1533 = vmatmul.mubr.bf16.gmra.mxu0 %v1405
    %v1534 = vpop.f32.mrf.mxu0
    %v1535 = vadd.f32 %v1265, %v1534
    %v1536 = vpop.f32.mrf.mxu0
    %v1537 = vpop.f32.mrf.mxu0
    %v1538 = vadd.f32 %v1270, %v1537
    %v1539 = vpop.f32.mrf.mxu0
    %1540 = vmatprep.mubr.bf16.mxu0 0
    %1541 = vmatmul.mubr.bf16.gmra.mxu0 %v1406
    %v1542 = vpop.f32.mrf.mxu0
    %v1543 = vadd.f32 %v1275, %v1542
    %v1544 = vpop.f32.mrf.mxu0
    %v1545 = vpop.f32.mrf.mxu0
    %v1546 = vadd.f32 %v1280, %v1545
    %v1547 = vpop.f32.mrf.mxu0
    %1548 = vmatprep.mubr.bf16.mxu0 0
    %1549 = vmatmul.mubr.bf16.gmra.mxu0 %v1407
    %v1550 = vpop.f32.mrf.mxu0
    %v1551 = vadd.f32 %v1285, %v1550
    %v1552 = vpop.f32.mrf.mxu0
    %v1553 = vpop.f32.mrf.mxu0
    %v1554 = vadd.f32 %v1290, %v1553
    %v1555 = vpop.f32.mrf.mxu0
    %1556 = vmatprep.mubr.bf16.mxu0 0
    %1557 = vmatmul.mubr.bf16.gmra.mxu0 %v1408
    %v1558 = vpop.f32.mrf.mxu0
    %v1559 = vadd.f32 %v1295, %v1558
    %v1560 = vpop.f32.mrf.mxu0
    %v1561 = vpop.f32.mrf.mxu0
    %v1562 = vadd.f32 %v1300, %v1561
    %v1563 = vpop.f32.mrf.mxu0
    %1564 = vmatprep.mubr.bf16.mxu0 0
    %1565 = vmatmul.mubr.bf16.gmra.mxu0 %v1409
    %v1566 = vpop.f32.mrf.mxu0
    %v1567 = vadd.f32 %v1305, %v1566
    %v1568 = vpop.f32.mrf.mxu0
    %v1569 = vpop.f32.mrf.mxu0
    %v1570 = vadd.f32 %v1310, %v1569
    %v1571 = vpop.f32.mrf.mxu0
    %1572 = vmatprep.mubr.bf16.mxu0 0
    %1573 = vmatmul.mubr.bf16.gmra.mxu0 %v1410
    %v1574 = vpop.f32.mrf.mxu0
    %v1575 = vadd.f32 %v1315, %v1574
    %v1576 = vpop.f32.mrf.mxu0
    %v1577 = vpop.f32.mrf.mxu0
    %v1578 = vadd.f32 %v1320, %v1577
    %v1579 = vpop.f32.mrf.mxu0
    %1580 = vmatprep.mubr.bf16.mxu0 0
    %1581 = vmatmul.mubr.bf16.gmra.mxu0 %v1411
    %v1582 = vpop.f32.mrf.mxu0
    %v1583 = vadd.f32 %v1325, %v1582
    %v1584 = vpop.f32.mrf.mxu0
    %v1585 = vpop.f32.mrf.mxu0
    %v1586 = vadd.f32 %v1330, %v1585
    %v1587 = vpop.f32.mrf.mxu0
    %1588 = vdwg.mxu0
    %v1589 = vmax.f32 %v1463, 0.0
    %v1590 = vmax.f32 %v1466, 0.0
    %v1591 = vmax.f32 %v1471, 0.0
    %v1592 = vmax.f32 %v1474, 0.0
    %v1593 = vmax.f32 %v1479, 0.0
    %v1594 = vmax.f32 %v1482, 0.0
    %v1595 = vmax.f32 %v1487, 0.0
    %v1596 = vmax.f32 %v1490, 0.0
    %v1597 = vmax.f32 %v1495, 0.0
    %v1598 = vmax.f32 %v1498, 0.0
    %v1599 = vmax.f32 %v1503, 0.0
    %v1600 = vmax.f32 %v1506, 0.0
    %v1601 = vmax.f32 %v1511, 0.0
    %v1602 = vmax.f32 %v1514, 0.0
    %v1603 = vmax.f32 %v1519, 0.0
    %v1604 = vmax.f32 %v1522, 0.0
    %v1605 = vmax.f32 %v1527, 0.0
    %v1606 = vmax.f32 %v1530, 0.0
    %v1607 = vmax.f32 %v1535, 0.0
    %v1608 = vmax.f32 %v1538, 0.0
    %v1609 = vmax.f32 %v1543, 0.0
    %v1610 = vmax.f32 %v1546, 0.0
    %v1611 = vmax.f32 %v1551, 0.0
    %v1612 = vmax.f32 %v1554, 0.0
    %v1613 = vmax.f32 %v1559, 0.0
    %v1614 = vmax.f32 %v1562, 0.0
    %v1615 = vmax.f32 %v1567, 0.0
    %v1616 = vmax.f32 %v1570, 0.0
    %v1617 = vmax.f32 %v1575, 0.0
    %v1618 = vmax.f32 %v1578, 0.0
    %v1619 = vmax.f32 %v1583, 0.0
    %v1620 = vmax.f32 %v1586, 0.0
    %v1621 = vld [vmem:[%s9] sm:$0xff]
    %v1622 = vld [vmem:[%s9 + $0x8] sm:$0xff]
    %v1623 = vld [vmem:[%s9 + $0x10] sm:$0xff]
    %v1624 = vld [vmem:[%s9 + $0x18] sm:$0xff]
    %v1625 = vld [vmem:[%s9 + $0x20] sm:$0xff]
    %v1626 = vld [vmem:[%s9 + $0x28] sm:$0xff]
    %v1627 = vld [vmem:[%s9 + $0x30] sm:$0xff]
    %v1628 = vld [vmem:[%s9 + $0x38] sm:$0xff]
    %v1629 = vld [vmem:[%s9 + $0x40] sm:$0xff]
    %v1630 = vld [vmem:[%s9 + $0x48] sm:$0xff]
    %v1631 = vld [vmem:[%s9 + $0x50] sm:$0xff]
    %v1632 = vld [vmem:[%s9 + $0x58] sm:$0xff]
    %v1633 = vld [vmem:[%s9 + $0x60] sm:$0xff]
    %v1634 = vld [vmem:[%s9 + $0x68] sm:$0xff]
    %v1635 = vld [vmem:[%s9 + $0x70] sm:$0xff]
    %v1636 = vld [vmem:[%s9 + $0x78] sm:$0xff]
    %v1637 = vpack.c.bf16 %v1590, %v1589
    %v1638 = vpack.c.bf16 %v1592, %v1591
    %v1639 = vpack.c.bf16 %v1594, %v1593
    %v1640 = vpack.c.bf16 %v1596, %v1595
    %v1641 = vpack.c.bf16 %v1598, %v1597
    %v1642 = vpack.c.bf16 %v1600, %v1599
    %v1643 = vpack.c.bf16 %v1602, %v1601
    %v1644 = vpack.c.bf16 %v1604, %v1603
    %v1645 = vpack.c.bf16 %v1606, %v1605
    %v1646 = vpack.c.bf16 %v1608, %v1607
    %v1647 = vpack.c.bf16 %v1610, %v1609
    %v1648 = vpack.c.bf16 %v1612, %v1611
    %v1649 = vpack.c.bf16 %v1614, %v1613
    %v1650 = vpack.c.bf16 %v1616, %v1615
    %v1651 = vpack.c.bf16 %v1618, %v1617
    %v1652 = vpack.c.bf16 %v1620, %v1619
    %v1653 = vld [vmem:[%s10] sm:$0xff]
    %v1654 = vld [vmem:[%s10 + $0x8] sm:$0xff]
    %v1655 = vld [vmem:[%s10 + $0x10] sm:$0xff]
    %v1656 = vld [vmem:[%s10 + $0x18] sm:$0xff]
    %v1657 = vld [vmem:[%s10 + $0x20] sm:$0xff]
    %v1658 = vld [vmem:[%s10 + $0x28] sm:$0xff]
    %v1659 = vld [vmem:[%s10 + $0x30] sm:$0xff]
    %v1660 = vld [vmem:[%s10 + $0x38] sm:$0xff]
    %v1661 = vld [vmem:[%s10 + $0x40] sm:$0xff]
    %v1662 = vld [vmem:[%s10 + $0x48] sm:$0xff]
    %v1663 = vld [vmem:[%s10 + $0x50] sm:$0xff]
    %v1664 = vld [vmem:[%s10 + $0x58] sm:$0xff]
    %v1665 = vld [vmem:[%s10 + $0x60] sm:$0xff]
    %v1666 = vld [vmem:[%s10 + $0x68] sm:$0xff]
    %v1667 = vld [vmem:[%s10 + $0x70] sm:$0xff]
    %v1668 = vld [vmem:[%s10 + $0x78] sm:$0xff]
    %1670 = vset.pattern.permute.xlu0 0
    %1671 = vperm.xlu0 %1670, %v1653
    %v1672 = vpop.permute.xlu0 %1671
    %1675 = vset.pattern.permute.xlu0 0
    %1676 = vperm.xlu0 %1675, %v1654
    %v1677 = vpop.permute.xlu0 %1676
    %1680 = vset.pattern.permute.xlu0 0
    %1681 = vperm.xlu0 %1680, %v1655
    %v1682 = vpop.permute.xlu0 %1681
    %1685 = vset.pattern.permute.xlu0 0
    %1686 = vperm.xlu0 %1685, %v1656
    %v1687 = vpop.permute.xlu0 %1686
    %1690 = vset.pattern.permute.xlu0 0
    %1691 = vperm.xlu0 %1690, %v1657
    %v1692 = vpop.permute.xlu0 %1691
    %1695 = vset.pattern.permute.xlu0 0
    %1696 = vperm.xlu0 %1695, %v1658
    %v1697 = vpop.permute.xlu0 %1696
    %1700 = vset.pattern.permute.xlu0 0
    %1701 = vperm.xlu0 %1700, %v1659
    %v1702 = vpop.permute.xlu0 %1701
    %1705 = vset.pattern.permute.xlu0 0
    %1706 = vperm.xlu0 %1705, %v1660
    %v1707 = vpop.permute.xlu0 %1706
    %1710 = vset.pattern.permute.xlu0 0
    %1711 = vperm.xlu0 %1710, %v1661
    %v1712 = vpop.permute.xlu0 %1711
    %1715 = vset.pattern.permute.xlu0 0
    %1716 = vperm.xlu0 %1715, %v1662
    %v1717 = vpop.permute.xlu0 %1716
    %1720 = vset.pattern.permute.xlu0 0
    %1721 = vperm.xlu0 %1720, %v1663
    %v1722 = vpop.permute.xlu0 %1721
    %1725 = vset.pattern.permute.xlu0 0
    %1726 = vperm.xlu0 %1725, %v1664
    %v1727 = vpop.permute.xlu0 %1726
    %1730 = vset.pattern.permute.xlu0 0
    %1731 = vperm.xlu0 %1730, %v1665
    %v1732 = vpop.permute.xlu0 %1731
    %1735 = vset.pattern.permute.xlu0 0
    %1736 = vperm.xlu0 %1735, %v1666
    %v1737 = vpop.permute.xlu0 %1736
    %1740 = vset.pattern.permute.xlu0 0
    %1741 = vperm.xlu0 %1740, %v1667
    %v1742 = vpop.permute.xlu0 %1741
    %1745 = vset.pattern.permute.xlu0 0
    %1746 = vperm.xlu0 %1745, %v1668
    %v1747 = vpop.permute.xlu0 %1746
    %v1765 = vunpack.c.l.b16 %v1621
    %v1766 = vunpack.c.h.b16 %v1621
    %v1767 = vunpack.c.l.b16 %v1622
    %v1768 = vunpack.c.h.b16 %v1622
    %v1769 = vunpack.c.l.b16 %v1623
    %v1770 = vunpack.c.h.b16 %v1623
    %v1771 = vunpack.c.l.b16 %v1624
    %v1772 = vunpack.c.h.b16 %v1624
    %v1773 = vunpack.c.l.b16 %v1625
    %v1774 = vunpack.c.h.b16 %v1625
    %v1775 = vunpack.c.l.b16 %v1626
    %v1776 = vunpack.c.h.b16 %v1626
    %v1777 = vunpack.c.l.b16 %v1627
    %v1778 = vunpack.c.h.b16 %v1627
    %v1779 = vunpack.c.l.b16 %v1628
    %v1780 = vunpack.c.h.b16 %v1628
    %v1781 = vunpack.c.l.b16 %v1629
    %v1782 = vunpack.c.h.b16 %v1629
    %v1783 = vunpack.c.l.b16 %v1630
    %v1784 = vunpack.c.h.b16 %v1630
    %v1785 = vunpack.c.l.b16 %v1631
    %v1786 = vunpack.c.h.b16 %v1631
    %v1787 = vunpack.c.l.b16 %v1632
    %v1788 = vunpack.c.h.b16 %v1632
    %v1789 = vunpack.c.l.b16 %v1633
    %v1790 = vunpack.c.h.b16 %v1633
    %v1791 = vunpack.c.l.b16 %v1634
    %v1792 = vunpack.c.h.b16 %v1634
    %v1793 = vunpack.c.l.b16 %v1635
    %v1794 = vunpack.c.h.b16 %v1635
    %v1795 = vunpack.c.l.b16 %v1636
    %v1796 = vunpack.c.h.b16 %v1636
    %v1797 = vpack.c.b16 %v1767, %v1765
    %v1798 = vpack.c.b16 %v1768, %v1766
    %v1799 = vpack.c.b16 %v1771, %v1769
    %v1800 = vpack.c.b16 %v1772, %v1770
    %v1801 = vpack.c.b16 %v1775, %v1773
    %v1802 = vpack.c.b16 %v1776, %v1774
    %v1803 = vpack.c.b16 %v1779, %v1777
    %v1804 = vpack.c.b16 %v1780, %v1778
    %v1805 = vpack.c.b16 %v1783, %v1781
    %v1806 = vpack.c.b16 %v1784, %v1782
    %v1807 = vpack.c.b16 %v1787, %v1785
    %v1808 = vpack.c.b16 %v1788, %v1786
    %v1809 = vpack.c.b16 %v1791, %v1789
    %v1810 = vpack.c.b16 %v1792, %v1790
    %v1811 = vpack.c.b16 %v1795, %v1793
    %v1812 = vpack.c.b16 %v1796, %v1794
    %1829 = vmatprep.subr.bf16.mxu0 0
    %1830 = vmatpush1.bf16.msra.mxu0 %v1644
    %1831 = vmatprep.subr.bf16.mxu0 0
    %1832 = vmatpush1.bf16.msra.mxu0 %v1643
    %1833 = vmatprep.subr.bf16.mxu0 0
    %1834 = vmatpush1.bf16.msra.mxu0 %v1642
    %1835 = vmatprep.subr.bf16.mxu0 0
    %1836 = vmatpush1.bf16.msra.mxu0 %v1641
    %1837 = vmatprep.subr.bf16.mxu0 0
    %1838 = vmatpush1.bf16.msra.mxu0 %v1640
    %1839 = vmatprep.subr.bf16.mxu0 0
    %1840 = vmatpush1.bf16.msra.mxu0 %v1639
    %1841 = vmatprep.subr.bf16.mxu0 0
    %1842 = vmatpush1.bf16.msra.mxu0 %v1638
    %1843 = vmatprep.subr.bf16.mxu0 0
    %1844 = vmatpush1.bf16.msra.mxu0 %v1637
    %1845 = vmatprep.subr.bf16.mxu0 0
    %1846 = vmatpush2.bf16.msra.mxu0 %v1652
    %1847 = vmatprep.subr.bf16.mxu0 0
    %1848 = vmatpush2.bf16.msra.mxu0 %v1651
    %1849 = vmatprep.subr.bf16.mxu0 0
    %1850 = vmatpush2.bf16.msra.mxu0 %v1650
    %1851 = vmatprep.subr.bf16.mxu0 0
    %1852 = vmatpush2.bf16.msra.mxu0 %v1649
    %1853 = vmatprep.subr.bf16.mxu0 0
    %1854 = vmatpush2.bf16.msra.mxu0 %v1648
    %1855 = vmatprep.subr.bf16.mxu0 0
    %1856 = vmatpush2.bf16.msra.mxu0 %v1647
    %1857 = vmatprep.subr.bf16.mxu0 0
    %1858 = vmatpush2.bf16.msra.mxu0 %v1646
    %1859 = vmatprep.subr.bf16.mxu0 0
    %1860 = vmatpush2.bf16.msra.mxu0 %v1645
    %1861 = vmatprep.mubr.bf16.mxu0 %v1798
    %1862 = vmatmul.mubr.bf16.gmra.mxu0 %v1797
    %v1863 = vpop.f32.mrf.mxu0
    %v1864 = vadd.f32 %v1672, %v1863
    %v1865 = vpop.f32.mrf.mxu0
    %v1866 = vpop.f32.mrf.mxu0
    %v1867 = vadd.f32 %v1677, %v1866
    %v1868 = vpop.f32.mrf.mxu0
    %1869 = vmatprep.mubr.bf16.mxu0 %v1800
    %1870 = vmatmul.mubr.bf16.gmra.mxu0 %v1799
    %v1871 = vpop.f32.mrf.mxu0
    %v1872 = vadd.f32 %v1682, %v1871
    %v1873 = vpop.f32.mrf.mxu0
    %v1874 = vpop.f32.mrf.mxu0
    %v1875 = vadd.f32 %v1687, %v1874
    %v1876 = vpop.f32.mrf.mxu0
    %1877 = vmatprep.mubr.bf16.mxu0 %v1802
    %1878 = vmatmul.mubr.bf16.gmra.mxu0 %v1801
    %v1879 = vpop.f32.mrf.mxu0
    %v1880 = vadd.f32 %v1692, %v1879
    %v1881 = vpop.f32.mrf.mxu0
    %v1882 = vpop.f32.mrf.mxu0
    %v1883 = vadd.f32 %v1697, %v1882
    %v1884 = vpop.f32.mrf.mxu0
    %1885 = vmatprep.mubr.bf16.mxu0 %v1804
    %1886 = vmatmul.mubr.bf16.gmra.mxu0 %v1803
    %v1887 = vpop.f32.mrf.mxu0
    %v1888 = vadd.f32 %v1702, %v1887
    %v1889 = vpop.f32.mrf.mxu0
    %v1890 = vpop.f32.mrf.mxu0
    %v1891 = vadd.f32 %v1707, %v1890
    %v1892 = vpop.f32.mrf.mxu0
    %1893 = vmatprep.mubr.bf16.mxu0 %v1806
    %1894 = vmatmul.mubr.bf16.gmra.mxu0 %v1805
    %v1895 = vpop.f32.mrf.mxu0
    %v1896 = vadd.f32 %v1712, %v1895
    %v1897 = vpop.f32.mrf.mxu0
    %v1898 = vpop.f32.mrf.mxu0
    %v1899 = vadd.f32 %v1717, %v1898
    %v1900 = vpop.f32.mrf.mxu0
    %1901 = vmatprep.mubr.bf16.mxu0 %v1808
    %1902 = vmatmul.mubr.bf16.gmra.mxu0 %v1807
    %v1903 = vpop.f32.mrf.mxu0
    %v1904 = vadd.f32 %v1722, %v1903
    %v1905 = vpop.f32.mrf.mxu0
    %v1906 = vpop.f32.mrf.mxu0
    %v1907 = vadd.f32 %v1727, %v1906
    %v1908 = vpop.f32.mrf.mxu0
    %1909 = vmatprep.mubr.bf16.mxu0 %v1810
    %1910 = vmatmul.mubr.bf16.gmra.mxu0 %v1809
    %v1911 = vpop.f32.mrf.mxu0
    %v1912 = vadd.f32 %v1732, %v1911
    %v1913 = vpop.f32.mrf.mxu0
    %v1914 = vpop.f32.mrf.mxu0
    %v1915 = vadd.f32 %v1737, %v1914
    %v1916 = vpop.f32.mrf.mxu0
    %1917 = vmatprep.mubr.bf16.mxu0 %v1812
    %1918 = vmatmul.mubr.bf16.gmra.mxu0 %v1811
    %v1919 = vpop.f32.mrf.mxu0
    %v1920 = vadd.f32 %v1742, %v1919
    %v1921 = vpop.f32.mrf.mxu0
    %v1922 = vpop.f32.mrf.mxu0
    %v1923 = vadd.f32 %v1747, %v1922
    %v1924 = vpop.f32.mrf.mxu0
    %1925 = vdwg.mxu0
    %v1926 = vmax.f32 %v1864, 0.0
    %v1927 = vmax.f32 %v1867, 0.0
    %v1928 = vmax.f32 %v1872, 0.0
    %v1929 = vmax.f32 %v1875, 0.0
    %v1930 = vmax.f32 %v1880, 0.0
    %v1931 = vmax.f32 %v1883, 0.0
    %v1932 = vmax.f32 %v1888, 0.0
    %v1933 = vmax.f32 %v1891, 0.0
    %v1934 = vmax.f32 %v1896, 0.0
    %v1935 = vmax.f32 %v1899, 0.0
    %v1936 = vmax.f32 %v1904, 0.0
    %v1937 = vmax.f32 %v1907, 0.0
    %v1938 = vmax.f32 %v1912, 0.0
    %v1939 = vmax.f32 %v1915, 0.0
    %v1940 = vmax.f32 %v1920, 0.0
    %v1941 = vmax.f32 %v1923, 0.0
    %v1942 = vld [vmem:[%s11] sm:$0xff]
    %v1943 = vld [vmem:[%s11 + $0x8] sm:$0xff]
    %v1944 = vld [vmem:[%s11 + $0x10] sm:$0xff]
    %v1945 = vld [vmem:[%s11 + $0x18] sm:$0xff]
    %v1946 = vld [vmem:[%s11 + $0x20] sm:$0xff]
    %v1947 = vld [vmem:[%s11 + $0x28] sm:$0xff]
    %v1948 = vld [vmem:[%s11 + $0x30] sm:$0xff]
    %v1949 = vld [vmem:[%s11 + $0x38] sm:$0xff]
    %v1950 = vld [vmem:[%s11 + $0x40] sm:$0xff]
    %v1951 = vld [vmem:[%s11 + $0x48] sm:$0xff]
    %v1952 = vld [vmem:[%s11 + $0x50] sm:$0xff]
    %v1953 = vld [vmem:[%s11 + $0x58] sm:$0xff]
    %v1954 = vld [vmem:[%s11 + $0x60] sm:$0xff]
    %v1955 = vld [vmem:[%s11 + $0x68] sm:$0xff]
    %v1956 = vld [vmem:[%s11 + $0x70] sm:$0xff]
    %v1957 = vld [vmem:[%s11 + $0x78] sm:$0xff]
    %1959 = vset.pattern.permute.xlu0 0
    %1960 = vperm.xlu0 %1959, %v1942
    %v1961 = vpop.permute.xlu0 %1960
    %1964 = vset.pattern.permute.xlu0 0
    %1965 = vperm.xlu0 %1964, %v1943
    %v1966 = vpop.permute.xlu0 %1965
    %1969 = vset.pattern.permute.xlu0 0
    %1970 = vperm.xlu0 %1969, %v1944
    %v1971 = vpop.permute.xlu0 %1970
    %1974 = vset.pattern.permute.xlu0 0
    %1975 = vperm.xlu0 %1974, %v1945
    %v1976 = vpop.permute.xlu0 %1975
    %1979 = vset.pattern.permute.xlu0 0
    %1980 = vperm.xlu0 %1979, %v1946
    %v1981 = vpop.permute.xlu0 %1980
    %1984 = vset.pattern.permute.xlu0 0
    %1985 = vperm.xlu0 %1984, %v1947
    %v1986 = vpop.permute.xlu0 %1985
    %1989 = vset.pattern.permute.xlu0 0
    %1990 = vperm.xlu0 %1989, %v1948
    %v1991 = vpop.permute.xlu0 %1990
    %1994 = vset.pattern.permute.xlu0 0
    %1995 = vperm.xlu0 %1994, %v1949
    %v1996 = vpop.permute.xlu0 %1995
    %1999 = vset.pattern.permute.xlu0 0
    %2000 = vperm.xlu0 %1999, %v1950
    %v2001 = vpop.permute.xlu0 %2000
    %2004 = vset.pattern.permute.xlu0 0
    %2005 = vperm.xlu0 %2004, %v1951
    %v2006 = vpop.permute.xlu0 %2005
    %2009 = vset.pattern.permute.xlu0 0
    %2010 = vperm.xlu0 %2009, %v1952
    %v2011 = vpop.permute.xlu0 %2010
    %2014 = vset.pattern.permute.xlu0 0
    %2015 = vperm.xlu0 %2014, %v1953
    %v2016 = vpop.permute.xlu0 %2015
    %2019 = vset.pattern.permute.xlu0 0
    %2020 = vperm.xlu0 %2019, %v1954
    %v2021 = vpop.permute.xlu0 %2020
    %2024 = vset.pattern.permute.xlu0 0
    %2025 = vperm.xlu0 %2024, %v1955
    %v2026 = vpop.permute.xlu0 %2025
    %2029 = vset.pattern.permute.xlu0 0
    %2030 = vperm.xlu0 %2029, %v1956
    %v2031 = vpop.permute.xlu0 %2030
    %2034 = vset.pattern.permute.xlu0 0
    %2035 = vperm.xlu0 %2034, %v1957
    %v2036 = vpop.permute.xlu0 %2035
    %v2038 = vmul.f32 %v1926, %v1961
    %v2039 = vmul.f32 %v1927, %v1966
    %v2040 = vmul.f32 %v1928, %v1971
    %v2041 = vmul.f32 %v1929, %v1976
    %v2042 = vmul.f32 %v1930, %v1981
    %v2043 = vmul.f32 %v1931, %v1986
    %v2044 = vmul.f32 %v1932, %v1991
    %v2045 = vmul.f32 %v1933, %v1996
    %v2046 = vmul.f32 %v1934, %v2001
    %v2047 = vmul.f32 %v1935, %v2006
    %v2048 = vmul.f32 %v1936, %v2011
    %v2049 = vmul.f32 %v1937, %v2016
    %v2050 = vmul.f32 %v1938, %v2021
    %v2051 = vmul.f32 %v1939, %v2026
    %v2052 = vmul.f32 %v1940, %v2031
    %v2053 = vmul.f32 %v1941, %v2036
    %v2054 = vsel %vm587, %v2038, 0.0
    %v2055 = vsel %vm587, %v2039, 0.0
    %v2056 = vadd.f32 %v2054, %v2055
    %v2057 = vsel %vm587, %v2040, 0.0
    %v2058 = vadd.f32 %v2056, %v2057
    %v2059 = vsel %vm587, %v2041, 0.0
    %v2060 = vadd.f32 %v2058, %v2059
    %v2061 = vsel %vm587, %v2042, 0.0
    %v2062 = vadd.f32 %v2060, %v2061
    %v2063 = vsel %vm587, %v2043, 0.0
    %v2064 = vadd.f32 %v2062, %v2063
    %v2065 = vsel %vm587, %v2044, 0.0
    %v2066 = vadd.f32 %v2064, %v2065
    %v2067 = vsel %vm587, %v2045, 0.0
    %v2068 = vadd.f32 %v2066, %v2067
    %v2069 = vsel %vm587, %v2046, 0.0
    %v2070 = vadd.f32 %v2068, %v2069
    %v2071 = vsel %vm587, %v2047, 0.0
    %v2072 = vadd.f32 %v2070, %v2071
    %v2073 = vsel %vm587, %v2048, 0.0
    %v2074 = vadd.f32 %v2072, %v2073
    %v2075 = vsel %vm587, %v2049, 0.0
    %v2076 = vadd.f32 %v2074, %v2075
    %v2077 = vsel %vm587, %v2050, 0.0
    %v2078 = vadd.f32 %v2076, %v2077
    %v2079 = vsel %vm587, %v2051, 0.0
    %v2080 = vadd.f32 %v2078, %v2079
    %v2081 = vsel %vm587, %v2052, 0.0
    %v2082 = vadd.f32 %v2080, %v2081
    %v2083 = vsel %vm587, %v2053, 0.0
    %v2084 = vadd.f32 %v2082, %v2083
    %v2085 = vrot.slane %v2084, 4
    %v2086 = vadd.f32 %v2084, %v2085
    %v2087 = vrot.slane %v2086, 2
    %v2088 = vadd.f32 %v2086, %v2087
    %v2089 = vrot.slane %v2088, 1
    %v2090 = vadd.f32 %v2088, %v2089
    %v2091 = vld [vmem:[#allocation2] sm:$0x1]
    %2093 = vset.pattern.permute.xlu0 0
    %2094 = vperm.xlu0 %2093, %v2091
    %v2095 = vpop.permute.xlu0 %2094
    %v2097 = vlaneseq
    %v2098 = vshrl.u32 %v2097, 7
    %v2099 = vsub.s32 0, %v2098
    %v2100 = vrot.slane %v2095, %v2099
    %v2101 = vadd.f32 %v2090, %v2100
    %vm2102 = vcmask 57344
    %2103 = vst.msk [vmem:[#allocation3] sm:$0x1] %vm2102, %v2101
    // Predicated region
    $region54: #{critic_forward.1} parent=1 // pred_check
      _
    $region55: #{critic_forward.1} parent=1 // pred_check_branch
      %2105 = sbr.rel (0) target = $region57
    $region56: #{critic_forward.1} parent=1 // pred_region
      %s2107 = ssub.s32 16, 16
      %2108 = vsyncadd [#allocation4], %s2107
      %s2110 = sshll.u32 [#allocation3], 4
      %s2111 = int_to_ptr.vmem [resolvable:$true] %s2110
      %2113 = dma.vmem_to_hbm [thread:$0]  %s2111, 16, %s13, [#allocation4]
    $region57: #{critic_forward.1} parent=1 // pred_fallthru
      _
    // Predicated region
    $region58: #{critic_forward.1} parent=1 // pred_check
      _
    $region59: #{critic_forward.1} parent=1 // pred_check_branch
      %2115 = sbr.rel (0) target = $region61
    $region60: #{critic_forward.1} parent=1 // pred_region
      %2116 = dma.done [#allocation4], 16
    $region61: #{critic_forward.1} parent=1 // pred_fallthru
      _
    %2117 = vsyncpa [#allocation4], 1

</llo_original>
